<compile_context>
chip_gen: v5e
topology: v5e:2x2
jax: 0.10.0
libtpu: 0.0.40
codegen_flags: <defaults>
</compile_context>

<pallas_src>
import functools

import jax
import jax.numpy as jnp
from jax import lax
from jax.experimental import pallas as pl
from jax.experimental.pallas import tpu as pltpu

_LN_EPS = 1e-5


def _layernorm_f32(v32, g, b):
    # Matches torch.nn.LayerNorm (biased variance, eps inside sqrt), in f32.
    mu = jnp.mean(v32, axis=-1, keepdims=True)
    var = jnp.mean(jnp.square(v32 - mu), axis=-1, keepdims=True)
    return (v32 - mu) * lax.rsqrt(var + _LN_EPS) * g + b


# --------------------------- kernel A: LN1 + fused QKV ----------------------
def _qkv_kernel(x_ref, g_ref, b_ref, w_ref, bias_ref, q_ref, k_ref, v_ref):
    D = x_ref.shape[-1]
    h = _layernorm_f32(x_ref[0].astype(jnp.float32), g_ref[...], b_ref[...])
    qkv = jnp.dot(h.astype(w_ref.dtype), w_ref[...],
                  preferred_element_type=jnp.float32) + bias_ref[...]
    q_ref[0] = qkv[:, 0 * D:1 * D].astype(q_ref.dtype)   # scaling already folded
    k_ref[0] = qkv[:, 1 * D:2 * D].astype(k_ref.dtype)
    v_ref[0] = qkv[:, 2 * D:3 * D].astype(v_ref.dtype)


# --------------------------- kernel B: attention (q-tiled) ------------------
def _attn_kernel(q_ref, k_ref, v_ref, m_ref, o_ref, *, softmax_dtype):
    q = q_ref[0]                                  # (H, tq, hd) compute dtype
    k = k_ref[0]                                  # (H, S,  hd)
    v = v_ref[0]                                  # (H, S,  hd)
    mask = m_ref[0].astype(jnp.float32)           # (tq, S)

    s = jnp.einsum('hqd,hkd->hqk', q, k,
                   preferred_element_type=jnp.float32) + mask[None, :, :]
    m = jnp.max(s, axis=-1, keepdims=True)
    p = jnp.exp((s - m).astype(softmax_dtype))
    l = jnp.sum(p.astype(jnp.float32), axis=-1, keepdims=True)      # (H, tq, 1)
    ctx = jnp.einsum('hqk,hkd->hqd', p.astype(v.dtype), v,
                     preferred_element_type=jnp.float32)            # (H, tq, hd)
    # Deferred softmax normalization: divide the small (H,tq,hd) context
    # instead of the (H,tq,S) probabilities.
    ctx = ctx * pl.reciprocal(l, approx=True)
    o_ref[0] = ctx.astype(o_ref.dtype)
    # TODO(synk): for very long S, additionally tile KV with an online-softmax
    # (flash) accumulation instead of keeping full-S K/V resident.


# ------------------ kernel C: out_proj + residual + LN2 + MLP ---------------
def _proj_mlp_kernel(x_ref, ctx_ref, w_out_ref, b_out_ref, g2_ref, bb2_ref,
                     w_fc_ref, b_fc_ref, w_proj_ref, b_proj_ref, o_ref,
                     x1_sc, h2_sc, acc_sc):
    c = pl.program_id(2)
    cdt = w_out_ref.dtype

    @pl.when(c == 0)
    def _():
        attn = jnp.dot(ctx_ref[0], w_out_ref[...],
                       preferred_element_type=jnp.float32) + b_out_ref[...]
        x1 = x_ref[0].astype(jnp.float32) + attn
        x1_sc[...] = x1
        h2_sc[...] = _layernorm_f32(x1, g2_ref[...], bb2_ref[...]).astype(cdt)
        acc_sc[...] = jnp.zeros_like(acc_sc)

    f = jnp.dot(h2_sc[...], w_fc_ref[...],
                preferred_element_type=jnp.float32) + b_fc_ref[...]
    g = f * jax.nn.sigmoid(1.702 * f)                       # QuickGELU
    acc_sc[...] += jnp.dot(g.astype(cdt), w_proj_ref[...],
                           preferred_element_type=jnp.float32)

    @pl.when(c == pl.num_programs(2) - 1)
    def _():
        o_ref[0] = (x1_sc[...] + acc_sc[...] + b_proj_ref[...]).astype(o_ref.dtype)


# --------------------------------- wrapper -----------------------------------
def _vmem_cap_bytes():
    try:
        return int(pltpu.get_tpu_info().vmem_capacity_bytes)
    except Exception:
        return 64 * 2 ** 20          # conservative: v7x per-core VMEM


def _vmem_limit(estimate_bytes):
    cap = _vmem_cap_bytes()
    return int(min(cap - 4 * 2 ** 20, max(32 * 2 ** 20, 2 * estimate_bytes)))


def _pick_divisor_tile(n, target, granule):
    """Largest t <= target with n % t == 0 and t % granule == 0, else n."""
    if n <= target:
        return n
    t = (target // granule) * granule
    while t >= granule:
        if n % t == 0:
            return t
        t -= granule
    return n


def residual_attention_block(x, attn_mask, params, num_heads, *,
                             compute_dtype=jnp.bfloat16,
                             softmax_dtype=jnp.float32,   # set bf16 on v6e/v7x
                             seq_tile=256, mlp_chunk=512):
    B, S, D = x.shape
    assert D % num_heads == 0
    hd = D // num_heads
    F = params["w_fc"].shape[0]
    scaling = float(hd) ** (-0.5)
    f32 = jnp.float32
    cdt = jnp.dtype(compute_dtype)
    cbytes = cdt.itemsize
    xbytes = x.dtype.itemsize

    ts = _pick_divisor_tile(S, seq_tile, 8)        # seq tile (kernels A & C)
    tq = _pick_divisor_tile(S, seq_tile, 8)        # query tile (kernel B)
    fc = _pick_divisor_tile(F, mlp_chunk, 128)     # MLP hidden chunk (kernel C)

    def row(v):
        return v.reshape(1, -1).astype(f32)

    # ---- host-side weight prep (runs once; fused by XLA, negligible) ----
    # Fold LoRA and the q scaling into the fused QKV weight/bias, transpose all
    # weights to (in_features, out_features) so the kernels never transpose.
    w_eff = params["w_in"] + params["lora_b"] @ params["lora_a"]       # (3D, D)
    qscale = jnp.concatenate([jnp.full((D,), scaling, f32),
                              jnp.ones((2 * D,), f32)])
    w_qkv_t = (w_eff * qscale[:, None]).T.astype(cdt)                  # (D, 3D)
    b_qkv = row(params["b_in"] * qscale)                               # (1, 3D)
    w_out_t = params["w_out"].T.astype(cdt)                            # (D, D)
    w_fc_t = params["w_fc"].T.astype(cdt)                              # (D, F)
    w_proj_t = params["w_proj"].T.astype(cdt)                          # (F, D)

    # Additive attention mask: shared (S,S) or per-batch (B,S,S); carried in
    # the compute dtype and sliced per q-tile by the BlockSpec.
    mask_arr = attn_mask.reshape(1, S, S) if attn_mask.ndim == 2 else attn_mask
    mask_arr = mask_arr.astype(cdt)
    mask_shared = mask_arr.shape[0] == 1

    def run(single_buffer):
        def wspec(shape):
            # Batch-invariant weights: constant index map; single-buffer them
            # so the pipeliner does not waste a second VMEM copy.
            if single_buffer:
                return pl.BlockSpec(shape, lambda *_: (0,) * len(shape),
                                    pipeline_mode=pl.Buffered(1))
            return pl.BlockSpec(shape, lambda *_: (0,) * len(shape))

        wbuf = 1 if single_buffer else 2

        # ------------------- kernel A: LN1 + fused QKV ----------------------
        est_a = (2 * ts * D * xbytes + 3 * 2 * ts * D * cbytes
                 + wbuf * D * 3 * D * cbytes
                 + ts * 3 * D * 4 + 2 * ts * D * 4)
        q, k, v = pl.pallas_call(
            _qkv_kernel,
            out_shape=[jax.ShapeDtypeStruct((B, S, D), cdt)] * 3,
            grid=(B, S // ts),
            in_specs=[
                pl.BlockSpec((1, ts, D), lambda b, s: (b, s, 0)),      # x
                wspec((1, D)), wspec((1, D)),                          # ln_1
                wspec((D, 3 * D)), wspec((1, 3 * D)),                  # qkv W/b
            ],
            out_specs=[pl.BlockSpec((1, ts, D), lambda b, s: (b, s, 0))] * 3,
            compiler_params=pltpu.CompilerParams(
                dimension_semantics=("parallel", "parallel"),
                vmem_limit_bytes=_vmem_limit(est_a)),
        )(x, row(params["ln1_g"]), row(params["ln1_b"]), w_qkv_t, b_qkv)

        # Head-major layout for attention: pure XLA layout plumbing (outside
        # the kernels -> no in-kernel lane slicing / stacking / transposes).
        def to_heads(t):
            return t.reshape(B, S, num_heads, hd).transpose(0, 2, 1, 3)

        q_hm, k_hm, v_hm = to_heads(q), to_heads(k), to_heads(v)

        # ------------------- kernel B: attention (q-tiled, full-S KV) -------
        if mask_shared:
            mask_spec = pl.BlockSpec((1, tq, S), lambda b, qi: (0, qi, 0))
        else:
            mask_spec = pl.BlockSpec((1, tq, S), lambda b, qi: (b, qi, 0))
        est_b = (2 * num_heads * tq * hd * cbytes
                 + 2 * 2 * num_heads * S * hd * cbytes
                 + 2 * tq * S * cbytes
                 + 2 * num_heads * tq * hd * cbytes
                 + num_heads * tq * S * (4 + cbytes)
                 + num_heads * tq * hd * 4)
        ctx_hm = pl.pallas_call(
            functools.partial(_attn_kernel, softmax_dtype=softmax_dtype),
            out_shape=jax.ShapeDtypeStruct((B, num_heads, S, hd), cdt),
            grid=(B, S // tq),
            in_specs=[
                pl.BlockSpec((1, num_heads, tq, hd), lambda b, qi: (b, 0, qi, 0)),
                pl.BlockSpec((1, num_heads, S, hd), lambda b, qi: (b, 0, 0, 0)),
                pl.BlockSpec((1, num_heads, S, hd), lambda b, qi: (b, 0, 0, 0)),
                mask_spec,
            ],
            out_specs=pl.BlockSpec((1, num_heads, tq, hd),
                                   lambda b, qi: (b, 0, qi, 0)),
            compiler_params=pltpu.CompilerParams(
                dimension_semantics=("parallel", "parallel"),
                vmem_limit_bytes=_vmem_limit(est_b)),
        )(q_hm, k_hm, v_hm, mask_arr)

        ctx = ctx_hm.transpose(0, 2, 1, 3).reshape(B, S, D)   # XLA layout op

        # ------------------- kernel C: out_proj + LN2 + chunked MLP ---------
        est_c = (2 * ts * D * (xbytes + cbytes)
                 + wbuf * D * D * cbytes
                 + 2 * (D * fc + fc * D) * cbytes
                 + 3 * ts * D * 4 + 2 * ts * fc * 4
                 + 2 * ts * D * xbytes)
        return pl.pallas_call(
            _proj_mlp_kernel,
            out_shape=jax.ShapeDtypeStruct((B, S, D), x.dtype),
            grid=(B, S // ts, F // fc),
            in_specs=[
                pl.BlockSpec((1, ts, D), lambda b, s, c: (b, s, 0)),   # x
                pl.BlockSpec((1, ts, D), lambda b, s, c: (b, s, 0)),   # ctx
                wspec((D, D)), wspec((1, D)),                          # out_proj
                wspec((1, D)), wspec((1, D)),                          # ln_2
                pl.BlockSpec((D, fc), lambda b, s, c: (0, c)),         # c_fc W
                pl.BlockSpec((1, fc), lambda b, s, c: (0, c)),         # c_fc b
                pl.BlockSpec((fc, D), lambda b, s, c: (c, 0)),         # c_proj W
                wspec((1, D)),                                         # c_proj b
            ],
            out_specs=pl.BlockSpec((1, ts, D), lambda b, s, c: (b, s, 0)),
            scratch_shapes=[
                pltpu.VMEM((ts, D), jnp.float32),   # x1 (attention residual)
                pltpu.VMEM((ts, D), cdt),           # ln_2(x1) in compute dtype
                pltpu.VMEM((ts, D), jnp.float32),   # MLP accumulator
            ],
            compiler_params=pltpu.CompilerParams(
                dimension_semantics=("parallel", "parallel", "arbitrary"),
                vmem_limit_bytes=_vmem_limit(est_c)),
        )(x, ctx, w_out_t, row(params["b_out"]),
          row(params["ln2_g"]), row(params["ln2_b"]),
          w_fc_t, row(params["b_fc"]),
          w_proj_t, row(params["b_proj"]))

    try:
        return run(hasattr(pl, "Buffered"))
    except Exception:        # single-buffered weights unsupported -> default
        return run(False)


# --------------------------------- reference ---------------------------------
def reference(x, mask, p, H):
    # Plain-JAX mirror of the PyTorch forward pass, for correctness checking.
    def ln(v, g, b):
        mu = v.mean(-1, keepdims=True)
        var = ((v - mu) ** 2).mean(-1, keepdims=True)
        return (v - mu) / jnp.sqrt(var + 1e-5) * g + b

    B, S, D = x.shape
    hd = D // H
    h = ln(x, p["ln1_g"], p["ln1_b"])
    qkv = h @ p["w_in"].T + p["b_in"]
    qkv = qkv + (h @ p["lora_a"].T) @ p["lora_b"].T
    qkv = qkv.reshape(B, S, 3, H, hd).transpose(2, 0, 3, 1, 4)
    q, k, v = qkv[0], qkv[1], qkv[2]
    q = q * (hd ** -0.5)
    attn = q @ jnp.swapaxes(k, -2, -1) + mask[:, None, :, :]
    attn = jax.nn.softmax(attn, axis=-1)
    o = (attn @ v).transpose(0, 2, 1, 3).reshape(B, S, D)
    o = o @ p["w_out"].T + p["b_out"]
    x1 = x + o
    h2 = ln(x1, p["ln2_g"], p["ln2_b"])
    f = h2 @ p["w_fc"].T + p["b_fc"]
    g = f * jax.nn.sigmoid(1.702 * f)
    return x1 + g @ p["w_proj"].T + p["b_proj"]


if __name__ == "__main__":
    B, S, D, H, R = 2, 8, 32, 4, 4   # small demo shapes (real: S, D multiples of 128)

    key = jax.random.PRNGKey(0)
    ks = jax.random.split(key, 12)
    sc = 0.05
    params = {
        "ln1_g": jnp.ones((D,), jnp.float32),
        "ln1_b": jnp.zeros((D,), jnp.float32),
        "w_in": sc * jax.random.normal(ks[0], (3 * D, D), jnp.float32),
        "b_in": sc * jax.random.normal(ks[1], (3 * D,), jnp.float32),
        "lora_a": sc * jax.random.normal(ks[2], (R, D), jnp.float32),
        "lora_b": sc * jax.random.normal(ks[3], (3 * D, R), jnp.float32),
        "w_out": sc * jax.random.normal(ks[4], (D, D), jnp.float32),
        "b_out": sc * jax.random.normal(ks[5], (D,), jnp.float32),
        "ln2_g": jnp.ones((D,), jnp.float32),
        "ln2_b": jnp.zeros((D,), jnp.float32),
        "w_fc": sc * jax.random.normal(ks[6], (4 * D, D), jnp.float32),
        "b_fc": sc * jax.random.normal(ks[7], (4 * D,), jnp.float32),
        "w_proj": sc * jax.random.normal(ks[8], (D, 4 * D), jnp.float32),
        "b_proj": sc * jax.random.normal(ks[9], (D,), jnp.float32),
    }

    x = jax.random.normal(ks[10], (B, S, D), jnp.float32)
    # Causal additive mask, shared across the batch (finite large negative).
    causal = jnp.where(jnp.tril(jnp.ones((S, S), jnp.bool_)), 0.0, -1e4).astype(jnp.float32)

    out = residual_attention_block(x, causal, params, H)
    out = jax.block_until_ready(out)

    ref = reference(x, jnp.broadcast_to(causal, (B, S, S)), params, H)
    assert out.shape == (B, S, D)
    assert jnp.allclose(out, ref, rtol=2e-2, atol=2e-2), (
        f"max abs diff = {jnp.max(jnp.abs(out - ref))}")

    print("KERNEL_OK")
</pallas_src>

<mosaic_0001>
module attributes {stable_mosaic.version = 11 : i64} {
  func.func @_qkv_kernel(%arg0: i32, %arg1: i32, %arg2: memref<1x8x32xf32, #tpu.memory_space<vmem>>, %arg3: memref<1x32xf32, #tpu.memory_space<vmem>>, %arg4: memref<1x32xf32, #tpu.memory_space<vmem>>, %arg5: memref<32x96xbf16, #tpu.memory_space<vmem>>, %arg6: memref<1x96xf32, #tpu.memory_space<vmem>>, %arg7: memref<1x8x32xbf16, #tpu.memory_space<vmem>>, %arg8: memref<1x8x32xbf16, #tpu.memory_space<vmem>>, %arg9: memref<1x8x32xbf16, #tpu.memory_space<vmem>>) attributes {dimension_semantics = [#tpu.dimension_semantics<parallel>, #tpu.dimension_semantics<parallel>], iteration_bounds = array<i64: 2, 1>, scalar_prefetch = 0 : i64, scratch_operands = 0 : i64, tpu.core_type = #tpu.core_type<tc>, window_params = [{transform_indices = @transform_0, window_bounds = array<i64: 1, 8, 32>}, {pipeline_mode = #tpu.pipeline_mode<synchronous>, transform_indices = @transform_1, window_bounds = array<i64: 1, 32>}, {pipeline_mode = #tpu.pipeline_mode<synchronous>, transform_indices = @transform_2, window_bounds = array<i64: 1, 32>}, {pipeline_mode = #tpu.pipeline_mode<synchronous>, transform_indices = @transform_3, window_bounds = array<i64: 32, 96>}, {pipeline_mode = #tpu.pipeline_mode<synchronous>, transform_indices = @transform_4, window_bounds = array<i64: 1, 96>}, {transform_indices = @transform_5, window_bounds = array<i64: 1, 8, 32>}, {transform_indices = @transform_6, window_bounds = array<i64: 1, 8, 32>}, {transform_indices = @transform_7, window_bounds = array<i64: 1, 8, 32>}]} {
    %c0 = arith.constant 0 : index
    %c0_0 = arith.constant 0 : index
    %c0_1 = arith.constant 0 : index
    %0 = vector.load %arg2[%c0, %c0_0, %c0_1] : memref<1x8x32xf32, #tpu.memory_space<vmem>>, vector<1x8x32xf32>
    %1 = vector.shape_cast %0 : vector<1x8x32xf32> to vector<8x32xf32>
    %c0_2 = arith.constant 0 : index
    %c0_3 = arith.constant 0 : index
    %2 = vector.load %arg3[%c0_2, %c0_3] : memref<1x32xf32, #tpu.memory_space<vmem>>, vector<1x32xf32>
    %c0_4 = arith.constant 0 : index
    %c0_5 = arith.constant 0 : index
    %3 = vector.load %arg4[%c0_4, %c0_5] : memref<1x32xf32, #tpu.memory_space<vmem>>, vector<1x32xf32>
    %cst = arith.constant dense<0.000000e+00> : vector<8xf32>
    %4 = vector.multi_reduction <add>, %1, %cst [1] : vector<8x32xf32> to vector<8xf32>
    %5 = vector.shape_cast %4 : vector<8xf32> to vector<8x1xf32>
    %cst_6 = arith.constant 3.200000e+01 : f32
    %6 = vector.broadcast %cst_6 : f32 to vector<8x1xf32>
    %7 = arith.divf %5, %6 : vector<8x1xf32>
    %8 = vector.broadcast %7 : vector<8x1xf32> to vector<8x32xf32>
    %9 = arith.subf %1, %8 : vector<8x32xf32>
    %10 = arith.mulf %9, %9 : vector<8x32xf32>
    %cst_7 = arith.constant dense<0.000000e+00> : vector<8xf32>
    %11 = vector.multi_reduction <add>, %10, %cst_7 [1] : vector<8x32xf32> to vector<8xf32>
    %12 = vector.shape_cast %11 : vector<8xf32> to vector<8x1xf32>
    %cst_8 = arith.constant 3.200000e+01 : f32
    %13 = vector.broadcast %cst_8 : f32 to vector<8x1xf32>
    %14 = arith.divf %12, %13 : vector<8x1xf32>
    %15 = vector.broadcast %7 : vector<8x1xf32> to vector<8x32xf32>
    %16 = arith.subf %1, %15 : vector<8x32xf32>
    %cst_9 = arith.constant 9.99999974E-6 : f32
    %17 = vector.broadcast %cst_9 : f32 to vector<8x1xf32>
    %18 = arith.addf %14, %17 : vector<8x1xf32>
    %19 = math.rsqrt %18 : vector<8x1xf32>
    %20 = vector.broadcast %19 : vector<8x1xf32> to vector<8x32xf32>
    %21 = arith.mulf %16, %20 : vector<8x32xf32>
    %22 = vector.broadcast %2 : vector<1x32xf32> to vector<8x32xf32>
    %23 = arith.mulf %21, %22 : vector<8x32xf32>
    %24 = vector.broadcast %3 : vector<1x32xf32> to vector<8x32xf32>
    %25 = arith.addf %23, %24 : vector<8x32xf32>
    %26 = arith.truncf %25 : vector<8x32xf32> to vector<8x32xbf16>
    %c0_10 = arith.constant 0 : index
    %c0_11 = arith.constant 0 : index
    %27 = vector.load %arg5[%c0_10, %c0_11] : memref<32x96xbf16, #tpu.memory_space<vmem>>, vector<32x96xbf16>
    %cst_12 = arith.constant dense<0.000000e+00> : vector<8x96xf32>
    %28 = tpu.matmul %26, %27, %cst_12 {dimension_numbers = #tpu.dot_dimension_numbers<[1], [0], [0], [1], [0, 0, 1, 1], [], []>} : vector<8x32xbf16>, vector<32x96xbf16>, vector<8x96xf32> -> vector<8x96xf32>
    %c0_13 = arith.constant 0 : index
    %c0_14 = arith.constant 0 : index
    %29 = vector.load %arg6[%c0_13, %c0_14] : memref<1x96xf32, #tpu.memory_space<vmem>>, vector<1x96xf32>
    %30 = vector.broadcast %29 : vector<1x96xf32> to vector<8x96xf32>
    %31 = arith.addf %28, %30 : vector<8x96xf32>
    %32 = vector.extract_strided_slice %31 {offsets = [0, 0], sizes = [8, 32], strides = [1, 1]} : vector<8x96xf32> to vector<8x32xf32>
    %33 = arith.truncf %32 : vector<8x32xf32> to vector<8x32xbf16>
    %c0_15 = arith.constant 0 : index
    %c0_16 = arith.constant 0 : index
    %c0_17 = arith.constant 0 : index
    %34 = vector.load %arg7[%c0_15, %c0_16, %c0_17] : memref<1x8x32xbf16, #tpu.memory_space<vmem>>, vector<1x8x32xbf16>
    %35 = vector.shape_cast %34 : vector<1x8x32xbf16> to vector<8x32xbf16>
    %36 = vector.shape_cast %33 : vector<8x32xbf16> to vector<1x8x32xbf16>
    tpu.vector_store %arg7[%c0_15, %c0_16, %c0_17], %36 {strides = array<i32>} : memref<1x8x32xbf16, #tpu.memory_space<vmem>>, vector<1x8x32xbf16>,
    %37 = vector.extract_strided_slice %31 {offsets = [0, 32], sizes = [8, 32], strides = [1, 1]} : vector<8x96xf32> to vector<8x32xf32>
    %38 = arith.truncf %37 : vector<8x32xf32> to vector<8x32xbf16>
    %c0_18 = arith.constant 0 : index
    %c0_19 = arith.constant 0 : index
    %c0_20 = arith.constant 0 : index
    %39 = vector.load %arg8[%c0_18, %c0_19, %c0_20] : memref<1x8x32xbf16, #tpu.memory_space<vmem>>, vector<1x8x32xbf16>
    %40 = vector.shape_cast %39 : vector<1x8x32xbf16> to vector<8x32xbf16>
    %41 = vector.shape_cast %38 : vector<8x32xbf16> to vector<1x8x32xbf16>
    tpu.vector_store %arg8[%c0_18, %c0_19, %c0_20], %41 {strides = array<i32>} : memref<1x8x32xbf16, #tpu.memory_space<vmem>>, vector<1x8x32xbf16>,
    %42 = vector.extract_strided_slice %31 {offsets = [0, 64], sizes = [8, 32], strides = [1, 1]} : vector<8x96xf32> to vector<8x32xf32>
    %43 = arith.truncf %42 : vector<8x32xf32> to vector<8x32xbf16>
    %c0_21 = arith.constant 0 : index
    %c0_22 = arith.constant 0 : index
    %c0_23 = arith.constant 0 : index
    %44 = vector.load %arg9[%c0_21, %c0_22, %c0_23] : memref<1x8x32xbf16, #tpu.memory_space<vmem>>, vector<1x8x32xbf16>
    %45 = vector.shape_cast %44 : vector<1x8x32xbf16> to vector<8x32xbf16>
    %46 = vector.shape_cast %43 : vector<8x32xbf16> to vector<1x8x32xbf16>
    tpu.vector_store %arg9[%c0_21, %c0_22, %c0_23], %46 {strides = array<i32>} : memref<1x8x32xbf16, #tpu.memory_space<vmem>>, vector<1x8x32xbf16>,
    return
  }
  func.func @transform_0(%arg0: i32, %arg1: i32) -> (i32, i32, i32) {
    %c0_i32 = arith.constant 0 : i32
    %c0_i32_0 = arith.constant 0 : i32
    return %arg0, %arg1, %c0_i32 : i32, i32, i32
  }
  func.func @transform_1(%arg0: i32, %arg1: i32) -> (i32, i32) {
    %c0_i32 = arith.constant 0 : i32
    %c0_i32_0 = arith.constant 0 : i32
    %c0_i32_1 = arith.constant 0 : i32
    return %c0_i32, %c0_i32_0 : i32, i32
  }
  func.func @transform_2(%arg0: i32, %arg1: i32) -> (i32, i32) {
    %c0_i32 = arith.constant 0 : i32
    %c0_i32_0 = arith.constant 0 : i32
    %c0_i32_1 = arith.constant 0 : i32
    return %c0_i32, %c0_i32_0 : i32, i32
  }
  func.func @transform_3(%arg0: i32, %arg1: i32) -> (i32, i32) {
    %c0_i32 = arith.constant 0 : i32
    %c0_i32_0 = arith.constant 0 : i32
    %c0_i32_1 = arith.constant 0 : i32
    return %c0_i32, %c0_i32_0 : i32, i32
  }
  func.func @transform_4(%arg0: i32, %arg1: i32) -> (i32, i32) {
    %c0_i32 = arith.constant 0 : i32
    %c0_i32_0 = arith.constant 0 : i32
    %c0_i32_1 = arith.constant 0 : i32
    return %c0_i32, %c0_i32_0 : i32, i32
  }
  func.func @transform_5(%arg0: i32, %arg1: i32) -> (i32, i32, i32) {
    %c0_i32 = arith.constant 0 : i32
    %c0_i32_0 = arith.constant 0 : i32
    return %arg0, %arg1, %c0_i32 : i32, i32, i32
  }
  func.func @transform_6(%arg0: i32, %arg1: i32) -> (i32, i32, i32) {
    %c0_i32 = arith.constant 0 : i32
    %c0_i32_0 = arith.constant 0 : i32
    return %arg0, %arg1, %c0_i32 : i32, i32, i32
  }
  func.func @transform_7(%arg0: i32, %arg1: i32) -> (i32, i32, i32) {
    %c0_i32 = arith.constant 0 : i32
    %c0_i32_0 = arith.constant 0 : i32
    return %arg0, %arg1, %c0_i32 : i32, i32, i32
  }
}

module attributes {stable_mosaic.version = 11 : i64} {
  func.func @_qkv_kernel(%arg0: i32, %arg1: i32, %arg2: memref<1x8x32xf32, #tpu.memory_space<vmem>>, %arg3: memref<1x32xf32, #tpu.memory_space<vmem>>, %arg4: memref<1x32xf32, #tpu.memory_space<vmem>>, %arg5: memref<32x96xbf16, #tpu.memory_space<vmem>>, %arg6: memref<1x96xf32, #tpu.memory_space<vmem>>, %arg7: memref<1x8x32xbf16, #tpu.memory_space<vmem>>, %arg8: memref<1x8x32xbf16, #tpu.memory_space<vmem>>, %arg9: memref<1x8x32xbf16, #tpu.memory_space<vmem>>) attributes {dimension_semantics = [#tpu.dimension_semantics<parallel>, #tpu.dimension_semantics<parallel>], iteration_bounds = array<i64: 2, 1>, scalar_prefetch = 0 : i64, scratch_operands = 0 : i64, tpu.core_type = #tpu.core_type<tc>, window_params = [{transform_indices = @transform_0, window_bounds = array<i64: 1, 8, 32>}, {pipeline_mode = #tpu.pipeline_mode<synchronous>, transform_indices = @transform_1, window_bounds = array<i64: 1, 32>}, {pipeline_mode = #tpu.pipeline_mode<synchronous>, transform_indices = @transform_2, window_bounds = array<i64: 1, 32>}, {pipeline_mode = #tpu.pipeline_mode<synchronous>, transform_indices = @transform_3, window_bounds = array<i64: 32, 96>}, {pipeline_mode = #tpu.pipeline_mode<synchronous>, transform_indices = @transform_4, window_bounds = array<i64: 1, 96>}, {transform_indices = @transform_5, window_bounds = array<i64: 1, 8, 32>}, {transform_indices = @transform_6, window_bounds = array<i64: 1, 8, 32>}, {transform_indices = @transform_7, window_bounds = array<i64: 1, 8, 32>}]} {
    %c0 = arith.constant 0 : index
    %c0_0 = arith.constant 0 : index
    %c0_1 = arith.constant 0 : index
    %0 = vector.load %arg2[%c0, %c0_0, %c0_1] : memref<1x8x32xf32, #tpu.memory_space<vmem>>, vector<1x8x32xf32>
    %1 = vector.shape_cast %0 : vector<1x8x32xf32> to vector<8x32xf32>
    %c0_2 = arith.constant 0 : index
    %c0_3 = arith.constant 0 : index
    %2 = vector.load %arg3[%c0_2, %c0_3] : memref<1x32xf32, #tpu.memory_space<vmem>>, vector<1x32xf32>
    %c0_4 = arith.constant 0 : index
    %c0_5 = arith.constant 0 : index
    %3 = vector.load %arg4[%c0_4, %c0_5] : memref<1x32xf32, #tpu.memory_space<vmem>>, vector<1x32xf32>
    %cst = arith.constant dense<0.000000e+00> : vector<8xf32>
    %4 = vector.multi_reduction <add>, %1, %cst [1] : vector<8x32xf32> to vector<8xf32>
    %5 = vector.shape_cast %4 : vector<8xf32> to vector<8x1xf32>
    %cst_6 = arith.constant 3.200000e+01 : f32
    %6 = vector.broadcast %cst_6 : f32 to vector<8x1xf32>
    %7 = arith.divf %5, %6 : vector<8x1xf32>
    %8 = vector.broadcast %7 : vector<8x1xf32> to vector<8x32xf32>
    %9 = arith.subf %1, %8 : vector<8x32xf32>
    %10 = arith.mulf %9, %9 : vector<8x32xf32>
    %cst_7 = arith.constant dense<0.000000e+00> : vector<8xf32>
    %11 = vector.multi_reduction <add>, %10, %cst_7 [1] : vector<8x32xf32> to vector<8xf32>
    %12 = vector.shape_cast %11 : vector<8xf32> to vector<8x1xf32>
    %cst_8 = arith.constant 3.200000e+01 : f32
    %13 = vector.broadcast %cst_8 : f32 to vector<8x1xf32>
    %14 = arith.divf %12, %13 : vector<8x1xf32>
    %15 = vector.broadcast %7 : vector<8x1xf32> to vector<8x32xf32>
    %16 = arith.subf %1, %15 : vector<8x32xf32>
    %cst_9 = arith.constant 9.99999974E-6 : f32
    %17 = vector.broadcast %cst_9 : f32 to vector<8x1xf32>
    %18 = arith.addf %14, %17 : vector<8x1xf32>
    %19 = math.rsqrt %18 : vector<8x1xf32>
    %20 = vector.broadcast %19 : vector<8x1xf32> to vector<8x32xf32>
    %21 = arith.mulf %16, %20 : vector<8x32xf32>
    %22 = vector.broadcast %2 : vector<1x32xf32> to vector<8x32xf32>
    %23 = arith.mulf %21, %22 : vector<8x32xf32>
    %24 = vector.broadcast %3 : vector<1x32xf32> to vector<8x32xf32>
    %25 = arith.addf %23, %24 : vector<8x32xf32>
    %26 = arith.truncf %25 : vector<8x32xf32> to vector<8x32xbf16>
    %c0_10 = arith.constant 0 : index
    %c0_11 = arith.constant 0 : index
    %27 = vector.load %arg5[%c0_10, %c0_11] : memref<32x96xbf16, #tpu.memory_space<vmem>>, vector<32x96xbf16>
    %cst_12 = arith.constant dense<0.000000e+00> : vector<8x96xf32>
    %28 = tpu.matmul %26, %27, %cst_12 {dimension_numbers = #tpu.dot_dimension_numbers<[1], [0], [0], [1], [0, 0, 1, 1], [], []>} : vector<8x32xbf16>, vector<32x96xbf16>, vector<8x96xf32> -> vector<8x96xf32>
    %c0_13 = arith.constant 0 : index
    %c0_14 = arith.constant 0 : index
    %29 = vector.load %arg6[%c0_13, %c0_14] : memref<1x96xf32, #tpu.memory_space<vmem>>, vector<1x96xf32>
    %30 = vector.broadcast %29 : vector<1x96xf32> to vector<8x96xf32>
    %31 = arith.addf %28, %30 : vector<8x96xf32>
    %32 = vector.extract_strided_slice %31 {offsets = [0, 0], sizes = [8, 32], strides = [1, 1]} : vector<8x96xf32> to vector<8x32xf32>
    %33 = arith.truncf %32 : vector<8x32xf32> to vector<8x32xbf16>
    %c0_15 = arith.constant 0 : index
    %c0_16 = arith.constant 0 : index
    %c0_17 = arith.constant 0 : index
    %34 = vector.load %arg7[%c0_15, %c0_16, %c0_17] : memref<1x8x32xbf16, #tpu.memory_space<vmem>>, vector<1x8x32xbf16>
    %35 = vector.shape_cast %34 : vector<1x8x32xbf16> to vector<8x32xbf16>
    %36 = vector.shape_cast %33 : vector<8x32xbf16> to vector<1x8x32xbf16>
    tpu.vector_store %arg7[%c0_15, %c0_16, %c0_17], %36 {strides = array<i32>} : memref<1x8x32xbf16, #tpu.memory_space<vmem>>, vector<1x8x32xbf16>,
    %37 = vector.extract_strided_slice %31 {offsets = [0, 32], sizes = [8, 32], strides = [1, 1]} : vector<8x96xf32> to vector<8x32xf32>
    %38 = arith.truncf %37 : vector<8x32xf32> to vector<8x32xbf16>
    %c0_18 = arith.constant 0 : index
    %c0_19 = arith.constant 0 : index
    %c0_20 = arith.constant 0 : index
    %39 = vector.load %arg8[%c0_18, %c0_19, %c0_20] : memref<1x8x32xbf16, #tpu.memory_space<vmem>>, vector<1x8x32xbf16>
    %40 = vector.shape_cast %39 : vector<1x8x32xbf16> to vector<8x32xbf16>
    %41 = vector.shape_cast %38 : vector<8x32xbf16> to vector<1x8x32xbf16>
    tpu.vector_store %arg8[%c0_18, %c0_19, %c0_20], %41 {strides = array<i32>} : memref<1x8x32xbf16, #tpu.memory_space<vmem>>, vector<1x8x32xbf16>,
    %42 = vector.extract_strided_slice %31 {offsets = [0, 64], sizes = [8, 32], strides = [1, 1]} : vector<8x96xf32> to vector<8x32xf32>
    %43 = arith.truncf %42 : vector<8x32xf32> to vector<8x32xbf16>
    %c0_21 = arith.constant 0 : index
    %c0_22 = arith.constant 0 : index
    %c0_23 = arith.constant 0 : index
    %44 = vector.load %arg9[%c0_21, %c0_22, %c0_23] : memref<1x8x32xbf16, #tpu.memory_space<vmem>>, vector<1x8x32xbf16>
    %45 = vector.shape_cast %44 : vector<1x8x32xbf16> to vector<8x32xbf16>
    %46 = vector.shape_cast %43 : vector<8x32xbf16> to vector<1x8x32xbf16>
    tpu.vector_store %arg9[%c0_21, %c0_22, %c0_23], %46 {strides = array<i32>} : memref<1x8x32xbf16, #tpu.memory_space<vmem>>, vector<1x8x32xbf16>,
    return
  }
  func.func @transform_0(%arg0: i32, %arg1: i32) -> (i32, i32, i32) {
    %c0_i32 = arith.constant 0 : i32
    %c0_i32_0 = arith.constant 0 : i32
    return %arg0, %arg1, %c0_i32 : i32, i32, i32
  }
  func.func @transform_1(%arg0: i32, %arg1: i32) -> (i32, i32) {
    %c0_i32 = arith.constant 0 : i32
    %c0_i32_0 = arith.constant 0 : i32
    %c0_i32_1 = arith.constant 0 : i32
    return %c0_i32, %c0_i32_0 : i32, i32
  }
  func.func @transform_2(%arg0: i32, %arg1: i32) -> (i32, i32) {
    %c0_i32 = arith.constant 0 : i32
    %c0_i32_0 = arith.constant 0 : i32
    %c0_i32_1 = arith.constant 0 : i32
    return %c0_i32, %c0_i32_0 : i32, i32
  }
  func.func @transform_3(%arg0: i32, %arg1: i32) -> (i32, i32) {
    %c0_i32 = arith.constant 0 : i32
    %c0_i32_0 = arith.constant 0 : i32
    %c0_i32_1 = arith.constant 0 : i32
    return %c0_i32, %c0_i32_0 : i32, i32
  }
  func.func @transform_4(%arg0: i32, %arg1: i32) -> (i32, i32) {
    %c0_i32 = arith.constant 0 : i32
    %c0_i32_0 = arith.constant 0 : i32
    %c0_i32_1 = arith.constant 0 : i32
    return %c0_i32, %c0_i32_0 : i32, i32
  }
  func.func @transform_5(%arg0: i32, %arg1: i32) -> (i32, i32, i32) {
    %c0_i32 = arith.constant 0 : i32
    %c0_i32_0 = arith.constant 0 : i32
    return %arg0, %arg1, %c0_i32 : i32, i32, i32
  }
  func.func @transform_6(%arg0: i32, %arg1: i32) -> (i32, i32, i32) {
    %c0_i32 = arith.constant 0 : i32
    %c0_i32_0 = arith.constant 0 : i32
    return %arg0, %arg1, %c0_i32 : i32, i32, i32
  }
  func.func @transform_7(%arg0: i32, %arg1: i32) -> (i32, i32, i32) {
    %c0_i32 = arith.constant 0 : i32
    %c0_i32_0 = arith.constant 0 : i32
    return %arg0, %arg1, %c0_i32 : i32, i32, i32
  }
}

</mosaic_0001>

<llo_original>
// kernel: tpu_custom_call.1
$region0: #{tpu_custom_call.1}
  #allocation0 [shape = 'u32[]', space=smem, size = 0x4, offset = 0x4, fixed_abs, tag = 'smem constant byte address 0x4 - core index']
  #allocation1 [shape = 'u32[72,128]{1,0:T(1,128)}', space=vmem, size = 0x9000, scoped, tag = 'internal scratch']
  %s0 = inlined_call_operand.hbm [shape: f32[2,8,32], index: 0, kind: input, shape index: {}]
  %s1 = inlined_call_operand.hbm [shape: f32[1,32], index: 1, kind: input, shape index: {}]
  %s2 = inlined_call_operand.vmem [shape: f32[1,32], index: 2, kind: input, shape index: {}]
  %s3 = inlined_call_operand.hbm [shape: bf16[32,96], index: 3, kind: input, shape index: {}]
  %s4 = inlined_call_operand.vmem [shape: f32[1,96], index: 4, kind: input, shape index: {}]
  %s5 = inlined_call_operand.hbm [shape: bf16[2,8,32], index: 5, kind: output, shape index: {0}]
  %s6 = inlined_call_operand.hbm [shape: bf16[2,8,32], index: 6, kind: output, shape index: {1}]
  %s7 = inlined_call_operand.hbm [shape: bf16[2,8,32], index: 7, kind: output, shape index: {2}]
  %8 = xla_tuple %s5, %s6, %s7
  %s9 = sld [smem:[#allocation0]]
  $region81: #{tpu_custom_call.1} parent=0
    _
  %s11 = ssub.s32 1, %s9
  %s12 = scalar_select 0, %s11, %s9
  $region1: #{tpu_custom_call.1} parent=0
    #allocation2 [shape = 'u8[8192]{0}', space=vmem, size = 0x2000, scoped, tag = 'input window, operand 0']
    #allocation3 [shape = 's32[2]{0}', space=sflag, size = 0x8, scoped, tag = 'scoped memory for tpu_custom_call.1']
    #allocation4 [shape = 's32[2]{0}', space=sflag, size = 0x8, scoped, tag = 'scoped memory for tpu_custom_call.1']
    #allocation5 [shape = 'u8[512]{0}', space=vmem, size = 0x400, scoped, tag = 'input window, operand 1, single buffered']
    #allocation6 [shape = 's32[1]{0}', space=sflag, size = 0x4, scoped, tag = 'scoped memory for tpu_custom_call.1']
    #allocation7 [shape = 'u8[8192]{0}', space=vmem, size = 0x2000, scoped, tag = 'input window, operand 3, single buffered']
    #allocation8 [shape = 'u8[4096]{0}', space=vmem, size = 0x1000, scoped, tag = 'output window, operand 0']
    #allocation9 [shape = 'u8[4096]{0}', space=vmem, size = 0x1000, scoped, tag = 'output window, operand 1']
    #allocation10 [shape = 's32[2]{0}', space=sflag, size = 0x8, scoped, tag = 'scoped memory for tpu_custom_call.1']
    #allocation11 [shape = 'u8[4096]{0}', space=vmem, size = 0x1000, scoped, tag = 'output window, operand 2']
    %13 = vsyncpa [#allocation3], 0
    %s14 = scalar_lea.sflag [#allocation3], 1
    %15 = vsyncpa %s14, 0
    %16 = vsyncpa [#allocation6], 0
    %17 = vsyncpa [#allocation4], 0
    %s18 = scalar_lea.sflag [#allocation4], 1
    %19 = vsyncpa %s18, 0
    %20 = vsyncpa [#allocation10], 0
    %s21 = scalar_lea.sflag [#allocation10], 1
    %22 = vsyncpa %s21, 0
    loop: start=0, step=1, limit=4
    $region2: #{tpu_custom_call.1} parent=1 // loop_pre_header
      _
    $region3: #{tpu_custom_call.1} parent=1 // loop_header
      %s24 = sphi 0, %s28
      %p25 = scmp.ge.s32.totalorder %s24, 4
      %s31 = sphi 0, %s43
      %s32 = sphi 0, %s39
      %s33 = sphi 0, %s31
      %s34 = sphi 0, %s32
      %s35 = sphi 0, %s33
      %s36 = sphi 0, %s34
      %s48 = sphi 0, %s50
      %s51 = sphi 0, %s48
      %s52 = sphi 0, %s51
      %s68 = sphi 0, %s52
      %s72 = sphi 0, %s72
      %s74 = sphi 0, %s72
      %s75 = sphi 0, %s74
      %s89 = sphi 0, %s75
      %s93 = sphi 0, %s93
      %s95 = sphi 0, %s93
      %s96 = sphi 0, %s95
      %s110 = sphi 0, %s96
      %s114 = sphi 0, %s114
      %s116 = sphi 0, %s114
      %s117 = sphi 0, %s116
      %s131 = sphi 0, %s117
      %s135 = sphi 0, %s135
      %s137 = sphi 0, %s135
      %s138 = sphi 0, %s137
      %s152 = sphi 0, %s138
      %s160 = sphi 0, %s162
      %s163 = sphi 0, %s160
      %s164 = sphi 0, %s163
      %s180 = sphi 0, %s164
      %s188 = sphi 0, %s190
      %s191 = sphi 0, %s188
      %s192 = sphi 0, %s191
      %s208 = sphi 0, %s192
      %s216 = sphi 0, %s218
      %s219 = sphi 0, %s216
      %s220 = sphi 0, %s219
      %s236 = sphi 0, %s220
    $region4: #{tpu_custom_call.1} parent=1 // loop_header_branch
      %27 = sbr.rel (%p25) target = $region8
    $region5: #{tpu_custom_call.1} parent=1 // loop_body
      %s29 = ssub.s32 %s24, 1
      %s30 = ssub.s32 %s24, 2
      %s37 = sadd.s32 1, %s32
      %p38 = scmp.ge.s32.totalorder %s37, 1
      %s39 = scalar_select %p38, 0, %s37
      %s40 = sadd.s32 1, %s31
      %s41 = scalar_select %p38, %s40, %s31
      %p42 = scmp.ge.s32.totalorder %s41, 2
      %s43 = scalar_select %p42, 0, %s41
      %s44 = ssub.s32 %s31, %s43
      %s45 = ssub.s32 %s32, %s39
      %s46 = sor.u32 %s44, %s45
      %p47 = scmp.eq.s32.totalorder %s46, 0
      %s49 = sadd.s32 %s48, 1
      %s50 = scalar_select %p47, %s48, %s49
      %p53 = pneg %p47
      %p54 = scmp.eq.s32.totalorder %s24, 1
      %p55 = por %p53, %p54
      %p56 = scmp.ne.s32.totalorder %s48, %s51
      %p57 = scmp.eq.s32.totalorder %s24, 0
      %p58 = por %p56, %p57
      %p59 = scmp.ne.s32.totalorder %s48, %s51
      %p60 = scmp.eq.s32.totalorder %s29, 1
      %p61 = por %p59, %p60
      %p62 = scmp.ne.s32.totalorder %s51, %s52
      %p63 = scmp.eq.s32.totalorder %s29, 0
      %p64 = por %p62, %p63
      %p65 = scmp.ne.s32.totalorder %s51, %s52
      %p66 = scmp.eq.s32.totalorder %s30, 1
      %p67 = por %p65, %p66
      %p69 = scmp.ne.s32.totalorder %s52, %s68
      %p70 = scmp.eq.s32.totalorder %s30, 0
      %p71 = por %p69, %p70
      %s73 = sadd.s32 %s72, 1
      %p76 = scmp.eq.s32.totalorder %s24, 1
      %p77 = scmp.ne.s32.totalorder %s72, %s74
      %p78 = scmp.eq.s32.totalorder %s24, 0
      %p79 = por %p77, %p78
      %p80 = scmp.ne.s32.totalorder %s72, %s74
      %p81 = scmp.eq.s32.totalorder %s29, 1
      %p82 = por %p80, %p81
      %p83 = scmp.ne.s32.totalorder %s74, %s75
      %p84 = scmp.eq.s32.totalorder %s29, 0
      %p85 = por %p83, %p84
      %p86 = scmp.ne.s32.totalorder %s74, %s75
      %p87 = scmp.eq.s32.totalorder %s30, 1
      %p88 = por %p86, %p87
      %p90 = scmp.ne.s32.totalorder %s75, %s89
      %p91 = scmp.eq.s32.totalorder %s30, 0
      %p92 = por %p90, %p91
      %s94 = sadd.s32 %s93, 1
      %p97 = scmp.eq.s32.totalorder %s24, 1
      %p98 = scmp.ne.s32.totalorder %s93, %s95
      %p99 = scmp.eq.s32.totalorder %s24, 0
      %p100 = por %p98, %p99
      %p101 = scmp.ne.s32.totalorder %s93, %s95
      %p102 = scmp.eq.s32.totalorder %s29, 1
      %p103 = por %p101, %p102
      %p104 = scmp.ne.s32.totalorder %s95, %s96
      %p105 = scmp.eq.s32.totalorder %s29, 0
      %p106 = por %p104, %p105
      %p107 = scmp.ne.s32.totalorder %s95, %s96
      %p108 = scmp.eq.s32.totalorder %s30, 1
      %p109 = por %p107, %p108
      %p111 = scmp.ne.s32.totalorder %s96, %s110
      %p112 = scmp.eq.s32.totalorder %s30, 0
      %p113 = por %p111, %p112
      %s115 = sadd.s32 %s114, 1
      %p118 = scmp.eq.s32.totalorder %s24, 1
      %p119 = scmp.ne.s32.totalorder %s114, %s116
      %p120 = scmp.eq.s32.totalorder %s24, 0
      %p121 = por %p119, %p120
      %p122 = scmp.ne.s32.totalorder %s114, %s116
      %p123 = scmp.eq.s32.totalorder %s29, 1
      %p124 = por %p122, %p123
      %p125 = scmp.ne.s32.totalorder %s116, %s117
      %p126 = scmp.eq.s32.totalorder %s29, 0
      %p127 = por %p125, %p126
      %p128 = scmp.ne.s32.totalorder %s116, %s117
      %p129 = scmp.eq.s32.totalorder %s30, 1
      %p130 = por %p128, %p129
      %p132 = scmp.ne.s32.totalorder %s117, %s131
      %p133 = scmp.eq.s32.totalorder %s30, 0
      %p134 = por %p132, %p133
      %s136 = sadd.s32 %s135, 1
      %p139 = scmp.eq.s32.totalorder %s24, 1
      %p140 = scmp.ne.s32.totalorder %s135, %s137
      %p141 = scmp.eq.s32.totalorder %s24, 0
      %p142 = por %p140, %p141
      %p143 = scmp.ne.s32.totalorder %s135, %s137
      %p144 = scmp.eq.s32.totalorder %s29, 1
      %p145 = por %p143, %p144
      %p146 = scmp.ne.s32.totalorder %s137, %s138
      %p147 = scmp.eq.s32.totalorder %s29, 0
      %p148 = por %p146, %p147
      %p149 = scmp.ne.s32.totalorder %s137, %s138
      %p150 = scmp.eq.s32.totalorder %s30, 1
      %p151 = por %p149, %p150
      %p153 = scmp.ne.s32.totalorder %s138, %s152
      %p154 = scmp.eq.s32.totalorder %s30, 0
      %p155 = por %p153, %p154
      %s156 = ssub.s32 %s31, %s43
      %s157 = ssub.s32 %s32, %s39
      %s158 = sor.u32 %s156, %s157
      %p159 = scmp.eq.s32.totalorder %s158, 0
      %s161 = sadd.s32 %s160, 1
      %s162 = scalar_select %p159, %s160, %s161
      %p165 = pneg %p159
      %p166 = scmp.eq.s32.totalorder %s24, 1
      %p167 = por %p165, %p166
      %p168 = scmp.ne.s32.totalorder %s160, %s163
      %p169 = scmp.eq.s32.totalorder %s24, 0
      %p170 = por %p168, %p169
      %p171 = scmp.ne.s32.totalorder %s160, %s163
      %p172 = scmp.eq.s32.totalorder %s29, 1
      %p173 = por %p171, %p172
      %p174 = scmp.ne.s32.totalorder %s163, %s164
      %p175 = scmp.eq.s32.totalorder %s29, 0
      %p176 = por %p174, %p175
      %p177 = scmp.ne.s32.totalorder %s163, %s164
      %p178 = scmp.eq.s32.totalorder %s30, 1
      %p179 = por %p177, %p178
      %p181 = scmp.ne.s32.totalorder %s164, %s180
      %p182 = scmp.eq.s32.totalorder %s30, 0
      %p183 = por %p181, %p182
      %s184 = ssub.s32 %s31, %s43
      %s185 = ssub.s32 %s32, %s39
      %s186 = sor.u32 %s184, %s185
      %p187 = scmp.eq.s32.totalorder %s186, 0
      %s189 = sadd.s32 %s188, 1
      %s190 = scalar_select %p187, %s188, %s189
      %p193 = pneg %p187
      %p194 = scmp.eq.s32.totalorder %s24, 1
      %p195 = por %p193, %p194
      %p196 = scmp.ne.s32.totalorder %s188, %s191
      %p197 = scmp.eq.s32.totalorder %s24, 0
      %p198 = por %p196, %p197
      %p199 = scmp.ne.s32.totalorder %s188, %s191
      %p200 = scmp.eq.s32.totalorder %s29, 1
      %p201 = por %p199, %p200
      %p202 = scmp.ne.s32.totalorder %s191, %s192
      %p203 = scmp.eq.s32.totalorder %s29, 0
      %p204 = por %p202, %p203
      %p205 = scmp.ne.s32.totalorder %s191, %s192
      %p206 = scmp.eq.s32.totalorder %s30, 1
      %p207 = por %p205, %p206
      %p209 = scmp.ne.s32.totalorder %s192, %s208
      %p210 = scmp.eq.s32.totalorder %s30, 0
      %p211 = por %p209, %p210
      %s212 = ssub.s32 %s31, %s43
      %s213 = ssub.s32 %s32, %s39
      %s214 = sor.u32 %s212, %s213
      %p215 = scmp.eq.s32.totalorder %s214, 0
      %s217 = sadd.s32 %s216, 1
      %s218 = scalar_select %p215, %s216, %s217
      %p221 = pneg %p215
      %p222 = scmp.eq.s32.totalorder %s24, 1
      %p223 = por %p221, %p222
      %p224 = scmp.ne.s32.totalorder %s216, %s219
      %p225 = scmp.eq.s32.totalorder %s24, 0
      %p226 = por %p224, %p225
      %p227 = scmp.ne.s32.totalorder %s216, %s219
      %p228 = scmp.eq.s32.totalorder %s29, 1
      %p229 = por %p227, %p228
      %p230 = scmp.ne.s32.totalorder %s219, %s220
      %p231 = scmp.eq.s32.totalorder %s29, 0
      %p232 = por %p230, %p231
      %p233 = scmp.ne.s32.totalorder %s219, %s220
      %p234 = scmp.eq.s32.totalorder %s30, 1
      %p235 = por %p233, %p234
      %p237 = scmp.ne.s32.totalorder %s220, %s236
      %p238 = scmp.eq.s32.totalorder %s30, 0
      %p239 = por %p237, %p238
      %p240 = scmp.le.s32.totalorder 1, %s24
      %p241 = scmp.lt.s32.totalorder %s24, 3
      %p242 = pnand %p240, %p241
      %p243 = pneg %p242
      // Predicated region
      $region9: #{tpu_custom_call.1} parent=5 // pred_check
        _
      $region10: #{tpu_custom_call.1} parent=5 // pred_check_branch
        %245 = sbr.rel (%p242) target = $region12
      $region11: #{tpu_custom_call.1} parent=5 // pred_region
        %s246 = ssub.s32 %s24, 1
        // Predicated region
        $region13: #{tpu_custom_call.1} parent=11 // pred_check
          %p247 = pneg %p85
        $region14: #{tpu_custom_call.1} parent=11 // pred_check_branch
          %249 = sbr.rel (%p247) target = $region16
        $region15: #{tpu_custom_call.1} parent=11 // pred_region
          %251 = vsyncadd [#allocation6], 0
          %s253 = sshll.u32 %s1, 4
          %s254 = int_to_ptr.hbm [resolvable:$true] %s253
          %s255 = sshll.u32 [#allocation5], 4
          %s256 = int_to_ptr.vmem [resolvable:$true] %s255
          %258 = dma.hbm_to_vmem [thread:$0]  %s254, 16, %s256, [#allocation6]
        $region16: #{tpu_custom_call.1} parent=11 // pred_fallthru
          _
        // Predicated region
        $region17: #{tpu_custom_call.1} parent=11 // pred_check
          %p259 = pneg %p106
        $region18: #{tpu_custom_call.1} parent=11 // pred_check_branch
          %261 = sbr.rel (%p259) target = $region20
        $region19: #{tpu_custom_call.1} parent=11 // pred_region
          _
        $region20: #{tpu_custom_call.1} parent=11 // pred_fallthru
          _
        // Predicated region
        $region21: #{tpu_custom_call.1} parent=11 // pred_check
          %p262 = pneg %p127
        $region22: #{tpu_custom_call.1} parent=11 // pred_check_branch
          %264 = sbr.rel (%p262) target = $region24
        $region23: #{tpu_custom_call.1} parent=11 // pred_region
          %266 = vsyncadd [#allocation6], 0
          %s267 = sshll.u32 %s3, 4
          %s268 = int_to_ptr.hbm [resolvable:$true] %s267
          %s269 = sshll.u32 [#allocation7], 4
          %s270 = int_to_ptr.vmem [resolvable:$true] %s269
          %275 = dma.hbm_to_vmem [thread:$0]  %s268, 256, %s270, [#allocation6], 64, 64, 4
        $region24: #{tpu_custom_call.1} parent=11 // pred_fallthru
          _
        // Predicated region
        $region25: #{tpu_custom_call.1} parent=11 // pred_check
          %p276 = pneg %p148
        $region26: #{tpu_custom_call.1} parent=11 // pred_check_branch
          %278 = sbr.rel (%p276) target = $region28
        $region27: #{tpu_custom_call.1} parent=11 // pred_region
          _
        $region28: #{tpu_custom_call.1} parent=11 // pred_fallthru
          _
      $region12: #{tpu_custom_call.1} parent=5 // pred_fallthru
        _
      %p279 = scmp.lt.s32.totalorder %s24, 2
      // Predicated region
      $region29: #{tpu_custom_call.1} parent=5 // pred_check
        %p280 = pneg %p279
      $region30: #{tpu_custom_call.1} parent=5 // pred_check_branch
        %282 = sbr.rel (%p280) target = $region32
      $region31: #{tpu_custom_call.1} parent=5 // pred_region
        // Predicated region
        $region33: #{tpu_custom_call.1} parent=31 // pred_check
          %p283 = pneg %p58
        $region34: #{tpu_custom_call.1} parent=31 // pred_check_branch
          %285 = sbr.rel (%p283) target = $region36
        $region35: #{tpu_custom_call.1} parent=31 // pred_region
          %s286 = sand.u32 %s48, 1
          %s287 = scalar_lea.sflag [#allocation3], %s286
          %s288 = sand.u32 %s48, 1
          %s289 = smul.addr %s288, 8
          %s290 = scalar_lea.vmem [#allocation2], %s289
          %292 = vsyncadd %s287, 0
          %s293 = sadd.s32 %s32, %s31
          %s294 = smul.addr %s293, 8
          %s295 = scalar_lea.hbm %s0, %s294
          %s297 = sshll.u32 %s295, 4
          %s298 = int_to_ptr.hbm [resolvable:$true] %s297
          %s299 = sshll.u32 %s290, 4
          %s300 = int_to_ptr.vmem [resolvable:$true] %s299
          %302 = dma.hbm_to_vmem [thread:$0]  %s298, 128, %s300, %s287
        $region36: #{tpu_custom_call.1} parent=31 // pred_fallthru
          _
      $region32: #{tpu_custom_call.1} parent=5 // pred_fallthru
        _
      %p303 = scmp.le.s32.totalorder 1, %s24
      %p304 = scmp.lt.s32.totalorder %s24, 3
      %p305 = pnand %p303, %p304
      %p306 = pneg %p305
      // Predicated region
      $region37: #{tpu_custom_call.1} parent=5 // pred_check
        _
      $region38: #{tpu_custom_call.1} parent=5 // pred_check_branch
        %308 = sbr.rel (%p305) target = $region40
      $region39: #{tpu_custom_call.1} parent=5 // pred_region
        %s309 = ssub.s32 %s24, 1
        %s310 = sand.u32 %s51, 1
        %s311 = scalar_lea.sflag [#allocation3], %s310
        %s312 = sand.u32 %s51, 1
        %s313 = smul.addr %s312, 8
        %s314 = scalar_lea.vmem [#allocation2], %s313
        // Predicated region
        $region41: #{tpu_custom_call.1} parent=39 // pred_check
          %p315 = pneg %p64
        $region42: #{tpu_custom_call.1} parent=39 // pred_check_branch
          %317 = sbr.rel (%p315) target = $region44
        $region43: #{tpu_custom_call.1} parent=39 // pred_region
          %319 = dma.done %s311, 128
        $region44: #{tpu_custom_call.1} parent=39 // pred_fallthru
          _
        // Predicated region
        $region45: #{tpu_custom_call.1} parent=39 // pred_check
          %p320 = pneg %p85
        $region46: #{tpu_custom_call.1} parent=39 // pred_check_branch
          %322 = sbr.rel (%p320) target = $region48
        $region47: #{tpu_custom_call.1} parent=39 // pred_region
          %324 = dma.done [#allocation6], 16
        $region48: #{tpu_custom_call.1} parent=39 // pred_fallthru
          _
        // Predicated region
        $region49: #{tpu_custom_call.1} parent=39 // pred_check
          %p325 = pneg %p127
        $region50: #{tpu_custom_call.1} parent=39 // pred_check_branch
          %327 = sbr.rel (%p325) target = $region52
        $region51: #{tpu_custom_call.1} parent=39 // pred_region
          %329 = dma.done [#allocation6], 256
        $region52: #{tpu_custom_call.1} parent=39 // pred_fallthru
          _
        %s330 = sand.u32 %s51, 1
        %s331 = scalar_lea.sflag [#allocation3], %s330
        %s332 = sand.u32 %s51, 1
        %s333 = smul.addr %s332, 8
        %s334 = scalar_lea.vmem [#allocation2], %s333
        %p335 = pneg %p64
        %p336 = pneg %p61
        %p337 = pneg %p85
        %p338 = pneg %p82
        %p339 = pneg %p106
        %p340 = pneg %p103
        %p341 = pneg %p127
        %p342 = pneg %p124
        %p343 = pneg %p148
        %p344 = pneg %p145
        %p345 = pneg %p176
        %p346 = pneg %p173
        %s347 = sand.u32 %s163, 1
        %s348 = scalar_lea.sflag [#allocation4], %s347
        %s349 = sand.u32 %s163, 1
        %s350 = smul.addr %s349, 4
        %s351 = scalar_lea.vmem [#allocation8], %s350
        %p352 = pneg %p204
        %p353 = pneg %p201
        %s354 = sand.u32 %s29, 1
        %s355 = scalar_lea.sflag [#allocation10], %s354
        %s356 = sand.u32 %s191, 1
        %s357 = smul.addr %s356, 4
        %s358 = scalar_lea.vmem [#allocation9], %s357
        %p359 = pneg %p232
        %p360 = pneg %p229
        %s361 = sand.u32 %s29, 1
        %s362 = scalar_lea.sflag [#allocation10], %s361
        %s363 = sand.u32 %s219, 1
        %s364 = smul.addr %s363, 4
        %s365 = scalar_lea.vmem [#allocation11], %s364
        %v367 = vld [vmem:[%s314] sm:$0xff]
        %v368 = vld [vmem:[#allocation5] sm:$0x1]
        %v369 = vld [vmem:[%s2] sm:$0x1]
        %vm370 = vcmask 261120
        %v371 = vsel %vm370, %v367, 0.0
        %372 = vadd.xlane.f32.xlu0 %v371
        %v373 = vpop.xlane.xlu0 %372
        %v374 = vrcp.pop 32.0
        %v375 = vmul.f32 32.0, %v374
        %v376 = vsub.f32 1.0, %v375
        %v377 = vmul.f32 %v374, %v376
        %v378 = vadd.f32 %v374, %v377
        %vm379 = vweird.f32 %v374
        %v380 = vsel %vm379, %v374, %v378
        %v381 = vmul.f32 %v373, %v380
        %v382 = vsub.f32 %v367, %v381
        %v383 = vmul.f32 %v382, %v382
        %v384 = vsel %vm370, %v383, 0.0
        %385 = vadd.xlane.f32.xlu0 %v384
        %v386 = vpop.xlane.xlu0 %385
        %v387 = vmul.f32 %v386, %v380
        %v388 = vadd.f32 %v387, 1e-05
        %v389 = vrsqrt.pop %v388
        %v390 = vmul.f32 %v389, %v388
        %v391 = vmul.f32 %v390, %v389
        %v392 = vmul.f32 0.5, %v391
        %v393 = vsub.f32 1.5, %v392
        %v394 = vmul.f32 %v389, %v393
        %vm395 = vweird.f32 %v388
        %vm396 = vweird.f32 %v389
        %vm397 = vmor %vm395, %vm396
        %v398 = vsel %vm397, %v389, %v394
        %v399 = vmul.f32 %v382, %v398
        %v401 = vperm.slane %v368, 0
        %v403 = vmul.f32 %v399, %v401
        %v405 = vperm.slane %v369, 0
        %v407 = vadd.f32 %v403, %v405
        %v408 = vpack.c.bf16 %v407, %v407
        %v409 = vld [vmem:[#allocation7] sm:$0xf]
        %v410 = vld [vmem:[#allocation7 + $0x4] sm:$0xf]
        %v411 = vld [vmem:[#allocation7 + $0x8] sm:$0xf]
        %v412 = vld [vmem:[#allocation7 + $0xc] sm:$0xf]
        %v413 = vld [vmem:[%s4] sm:$0x1]
        %v415 = vperm.slane %v413, 0
        %v421 = vunpack.c.l.b16 %v409
        %v422 = vunpack.c.l.b16 %v410
        %v423 = vunpack.c.l.b16 %v411
        %v424 = vunpack.c.l.b16 %v412
        %v425 = vpack.c.b16 %v422, %v421
        %v426 = vpack.c.b16 %v424, %v423
        %v430 = vsel %vm370, %v408, 0
        %432 = vmatpush.bf16.msra.mxu0 0
        %433 = vmatpush.bf16.msra.mxu0 0
        %434 = vmatpush.bf16.msra.mxu0 0
        %435 = vmatpush.bf16.msra.mxu0 0
        %436 = vmatpush.bf16.msra.mxu0 0
        %437 = vmatpush.bf16.msra.mxu0 0
        %438 = vmatpush.bf16.msra.mxu0 %v426
        %439 = vmatpush.bf16.msra.mxu0 %v425
        %440 = vmatmul.bf16.gmra.mxu0 %v430
        %v441 = vpop.f32.mrf.mxu0
        %v442 = vadd.f32 %v415, %v441
        %v443 = vpop.f32.mrf.mxu0
        %444 = vdwg.mxu0
        %v445 = vpack.c.bf16 %v442, %v442
        %vm446 = vcmask 257024
        %447 = vst.msk [vmem:[%s351] sm:$0xf] %vm446, %v445
        %449 = vrot.lane.b32.xlu0 %v445, 96
        %v450 = vpop.permute.xlu0 %449
        %452 = vst.msk [vmem:[%s358] sm:$0xf] %vm446, %v450
        %453 = vrot.lane.b32.xlu0 %v445, 64
        %v454 = vpop.permute.xlu0 %453
        %456 = vst.msk [vmem:[%s365] sm:$0xf] %vm446, %v454
        %s457 = sand.u32 %s163, 1
        %s458 = scalar_lea.sflag [#allocation4], %s457
        %s459 = sand.u32 %s163, 1
        %s460 = smul.addr %s459, 4
        %s461 = scalar_lea.vmem [#allocation8], %s460
        %s462 = sand.u32 %s29, 1
        %s463 = scalar_lea.sflag [#allocation10], %s462
        %s464 = sand.u32 %s191, 1
        %s465 = smul.addr %s464, 4
        %s466 = scalar_lea.vmem [#allocation9], %s465
        %s467 = sand.u32 %s29, 1
        %s468 = scalar_lea.sflag [#allocation10], %s467
        %s469 = sand.u32 %s219, 1
        %s470 = smul.addr %s469, 4
        %s471 = scalar_lea.vmem [#allocation11], %s470
        // Predicated region
        $region53: #{tpu_custom_call.1} parent=39 // pred_check
          %p472 = pneg %p173
        $region54: #{tpu_custom_call.1} parent=39 // pred_check_branch
          %474 = sbr.rel (%p472) target = $region56
        $region55: #{tpu_custom_call.1} parent=39 // pred_region
          %476 = vsyncadd %s458, 0
          %s477 = sadd.s32 %s34, %s33
          %s478 = smul.addr %s477, 4
          %s479 = scalar_lea.hbm %s5, %s478
          %s481 = sshll.u32 %s461, 4
          %s482 = int_to_ptr.vmem [resolvable:$true] %s481
          %s483 = sshll.u32 %s479, 4
          %s484 = int_to_ptr.hbm [resolvable:$true] %s483
          %486 = dma.vmem_to_hbm [thread:$0]  %s482, 64, %s484, %s458
        $region56: #{tpu_custom_call.1} parent=39 // pred_fallthru
          _
        // Predicated region
        $region57: #{tpu_custom_call.1} parent=39 // pred_check
          %p487 = pneg %p201
        $region58: #{tpu_custom_call.1} parent=39 // pred_check_branch
          %489 = sbr.rel (%p487) target = $region60
        $region59: #{tpu_custom_call.1} parent=39 // pred_region
          %491 = vsyncadd %s463, 0
          %s492 = sadd.s32 %s34, %s33
          %s493 = smul.addr %s492, 4
          %s494 = scalar_lea.hbm %s6, %s493
          %s496 = sshll.u32 %s466, 4
          %s497 = int_to_ptr.vmem [resolvable:$true] %s496
          %s498 = sshll.u32 %s494, 4
          %s499 = int_to_ptr.hbm [resolvable:$true] %s498
          %501 = dma.vmem_to_hbm [thread:$0]  %s497, 64, %s499, %s463
        $region60: #{tpu_custom_call.1} parent=39 // pred_fallthru
          _
        // Predicated region
        $region61: #{tpu_custom_call.1} parent=39 // pred_check
          %p502 = pneg %p229
        $region62: #{tpu_custom_call.1} parent=39 // pred_check_branch
          %504 = sbr.rel (%p502) target = $region64
        $region63: #{tpu_custom_call.1} parent=39 // pred_region
          %506 = vsyncadd %s468, 0
          %s507 = sadd.s32 %s34, %s33
          %s508 = smul.addr %s507, 4
          %s509 = scalar_lea.hbm %s7, %s508
          %s511 = sshll.u32 %s471, 4
          %s512 = int_to_ptr.vmem [resolvable:$true] %s511
          %s513 = sshll.u32 %s509, 4
          %s514 = int_to_ptr.hbm [resolvable:$true] %s513
          %516 = dma.vmem_to_hbm [thread:$0]  %s512, 64, %s514, %s468
        $region64: #{tpu_custom_call.1} parent=39 // pred_fallthru
          _
      $region40: #{tpu_custom_call.1} parent=5 // pred_fallthru
        _
      %p517 = scmp.le.s32.totalorder 2, %s24
      // Predicated region
      $region65: #{tpu_custom_call.1} parent=5 // pred_check
        %p518 = pneg %p517
      $region66: #{tpu_custom_call.1} parent=5 // pred_check_branch
        %520 = sbr.rel (%p518) target = $region68
      $region67: #{tpu_custom_call.1} parent=5 // pred_region
        %s521 = ssub.s32 %s24, 2
        // Predicated region
        $region69: #{tpu_custom_call.1} parent=67 // pred_check
          %p522 = pneg %p179
        $region70: #{tpu_custom_call.1} parent=67 // pred_check_branch
          %524 = sbr.rel (%p522) target = $region72
        $region71: #{tpu_custom_call.1} parent=67 // pred_region
          %s525 = sand.u32 %s164, 1
          %s526 = scalar_lea.sflag [#allocation4], %s525
          %s527 = sand.u32 %s164, 1
          %s528 = smul.addr %s527, 4
          %s529 = scalar_lea.vmem [#allocation8], %s528
          %531 = dma.done %s526, 64
        $region72: #{tpu_custom_call.1} parent=67 // pred_fallthru
          _
        // Predicated region
        $region73: #{tpu_custom_call.1} parent=67 // pred_check
          %p532 = pneg %p207
        $region74: #{tpu_custom_call.1} parent=67 // pred_check_branch
          %534 = sbr.rel (%p532) target = $region76
        $region75: #{tpu_custom_call.1} parent=67 // pred_region
          %s535 = sand.u32 %s30, 1
          %s536 = scalar_lea.sflag [#allocation10], %s535
          %s537 = sand.u32 %s192, 1
          %s538 = smul.addr %s537, 4
          %s539 = scalar_lea.vmem [#allocation9], %s538
          %541 = dma.done %s536, 64
        $region76: #{tpu_custom_call.1} parent=67 // pred_fallthru
          _
        // Predicated region
        $region77: #{tpu_custom_call.1} parent=67 // pred_check
          %p542 = pneg %p235
        $region78: #{tpu_custom_call.1} parent=67 // pred_check_branch
          %544 = sbr.rel (%p542) target = $region80
        $region79: #{tpu_custom_call.1} parent=67 // pred_region
          %s545 = sand.u32 %s30, 1
          %s546 = scalar_lea.sflag [#allocation10], %s545
          %s547 = sand.u32 %s220, 1
          %s548 = smul.addr %s547, 4
          %s549 = scalar_lea.vmem [#allocation11], %s548
          %551 = dma.done %s546, 64
        $region80: #{tpu_custom_call.1} parent=67 // pred_fallthru
          _
      $region68: #{tpu_custom_call.1} parent=5 // pred_fallthru
        _
    $region6: #{tpu_custom_call.1} parent=1 // loop_footer
      %s28 = sadd.s32 1, %s24
    $region7: #{tpu_custom_call.1} parent=1 // loop_footer_branch
      %23 = sbr.rel target = $region3
    $region8: #{tpu_custom_call.1} parent=1 // loop_exit
      _
    %552 = vsyncpa [#allocation3], 1
    %s553 = scalar_lea.sflag [#allocation3], 1
    %554 = vsyncpa %s553, 1
    %555 = vsyncpa [#allocation6], 1
    %556 = vsyncpa [#allocation4], 1
    %s557 = scalar_lea.sflag [#allocation4], 1
    %558 = vsyncpa %s557, 1
    %559 = vsyncpa [#allocation10], 1
    %s560 = scalar_lea.sflag [#allocation10], 1
    %561 = vsyncpa %s560, 1

// kernel: tpu_custom_call.1
$region0: #{tpu_custom_call.1}
  #allocation0 [shape = 'u32[]', space=smem, size = 0x4, offset = 0x4, fixed_abs, tag = 'smem constant byte address 0x4 - core index']
  #allocation1 [shape = 'u32[72,128]{1,0:T(1,128)}', space=vmem, size = 0x9000, scoped, tag = 'internal scratch']
  %s0 = inlined_call_operand.hbm [shape: f32[2,8,32], index: 0, kind: input, shape index: {}]
  %s1 = inlined_call_operand.hbm [shape: f32[1,32], index: 1, kind: input, shape index: {}]
  %s2 = inlined_call_operand.vmem [shape: f32[1,32], index: 2, kind: input, shape index: {}]
  %s3 = inlined_call_operand.hbm [shape: bf16[32,96], index: 3, kind: input, shape index: {}]
  %s4 = inlined_call_operand.vmem [shape: f32[1,96], index: 4, kind: input, shape index: {}]
  %s5 = inlined_call_operand.hbm [shape: bf16[2,8,32], index: 5, kind: output, shape index: {0}]
  %s6 = inlined_call_operand.hbm [shape: bf16[2,8,32], index: 6, kind: output, shape index: {1}]
  %s7 = inlined_call_operand.hbm [shape: bf16[2,8,32], index: 7, kind: output, shape index: {2}]
  %8 = xla_tuple %s5, %s6, %s7
  %s9 = sld [smem:[#allocation0]]
  $region81: #{tpu_custom_call.1} parent=0
    _
  %s11 = ssub.s32 1, %s9
  %s12 = scalar_select 0, %s11, %s9
  $region1: #{tpu_custom_call.1} parent=0
    #allocation2 [shape = 'u8[8192]{0}', space=vmem, size = 0x2000, scoped, tag = 'input window, operand 0']
    #allocation3 [shape = 's32[2]{0}', space=sflag, size = 0x8, scoped, tag = 'scoped memory for tpu_custom_call.1']
    #allocation4 [shape = 's32[2]{0}', space=sflag, size = 0x8, scoped, tag = 'scoped memory for tpu_custom_call.1']
    #allocation5 [shape = 'u8[512]{0}', space=vmem, size = 0x400, scoped, tag = 'input window, operand 1, single buffered']
    #allocation6 [shape = 's32[1]{0}', space=sflag, size = 0x4, scoped, tag = 'scoped memory for tpu_custom_call.1']
    #allocation7 [shape = 'u8[8192]{0}', space=vmem, size = 0x2000, scoped, tag = 'input window, operand 3, single buffered']
    #allocation8 [shape = 'u8[4096]{0}', space=vmem, size = 0x1000, scoped, tag = 'output window, operand 0']
    #allocation9 [shape = 'u8[4096]{0}', space=vmem, size = 0x1000, scoped, tag = 'output window, operand 1']
    #allocation10 [shape = 's32[2]{0}', space=sflag, size = 0x8, scoped, tag = 'scoped memory for tpu_custom_call.1']
    #allocation11 [shape = 'u8[4096]{0}', space=vmem, size = 0x1000, scoped, tag = 'output window, operand 2']
    %13 = vsyncpa [#allocation3], 0
    %s14 = scalar_lea.sflag [#allocation3], 1
    %15 = vsyncpa %s14, 0
    %16 = vsyncpa [#allocation6], 0
    %17 = vsyncpa [#allocation4], 0
    %s18 = scalar_lea.sflag [#allocation4], 1
    %19 = vsyncpa %s18, 0
    %20 = vsyncpa [#allocation10], 0
    %s21 = scalar_lea.sflag [#allocation10], 1
    %22 = vsyncpa %s21, 0
    loop: start=0, step=1, limit=4
    $region2: #{tpu_custom_call.1} parent=1 // loop_pre_header
      _
    $region3: #{tpu_custom_call.1} parent=1 // loop_header
      %s24 = sphi 0, %s28
      %p25 = scmp.ge.s32.totalorder %s24, 4
      %s31 = sphi 0, %s43
      %s32 = sphi 0, %s39
      %s33 = sphi 0, %s31
      %s34 = sphi 0, %s32
      %s35 = sphi 0, %s33
      %s36 = sphi 0, %s34
      %s48 = sphi 0, %s50
      %s51 = sphi 0, %s48
      %s52 = sphi 0, %s51
      %s68 = sphi 0, %s52
      %s72 = sphi 0, %s72
      %s74 = sphi 0, %s72
      %s75 = sphi 0, %s74
      %s89 = sphi 0, %s75
      %s93 = sphi 0, %s93
      %s95 = sphi 0, %s93
      %s96 = sphi 0, %s95
      %s110 = sphi 0, %s96
      %s114 = sphi 0, %s114
      %s116 = sphi 0, %s114
      %s117 = sphi 0, %s116
      %s131 = sphi 0, %s117
      %s135 = sphi 0, %s135
      %s137 = sphi 0, %s135
      %s138 = sphi 0, %s137
      %s152 = sphi 0, %s138
      %s160 = sphi 0, %s162
      %s163 = sphi 0, %s160
      %s164 = sphi 0, %s163
      %s180 = sphi 0, %s164
      %s188 = sphi 0, %s190
      %s191 = sphi 0, %s188
      %s192 = sphi 0, %s191
      %s208 = sphi 0, %s192
      %s216 = sphi 0, %s218
      %s219 = sphi 0, %s216
      %s220 = sphi 0, %s219
      %s236 = sphi 0, %s220
    $region4: #{tpu_custom_call.1} parent=1 // loop_header_branch
      %27 = sbr.rel (%p25) target = $region8
    $region5: #{tpu_custom_call.1} parent=1 // loop_body
      %s29 = ssub.s32 %s24, 1
      %s30 = ssub.s32 %s24, 2
      %s37 = sadd.s32 1, %s32
      %p38 = scmp.ge.s32.totalorder %s37, 1
      %s39 = scalar_select %p38, 0, %s37
      %s40 = sadd.s32 1, %s31
      %s41 = scalar_select %p38, %s40, %s31
      %p42 = scmp.ge.s32.totalorder %s41, 2
      %s43 = scalar_select %p42, 0, %s41
      %s44 = ssub.s32 %s31, %s43
      %s45 = ssub.s32 %s32, %s39
      %s46 = sor.u32 %s44, %s45
      %p47 = scmp.eq.s32.totalorder %s46, 0
      %s49 = sadd.s32 %s48, 1
      %s50 = scalar_select %p47, %s48, %s49
      %p53 = pneg %p47
      %p54 = scmp.eq.s32.totalorder %s24, 1
      %p55 = por %p53, %p54
      %p56 = scmp.ne.s32.totalorder %s48, %s51
      %p57 = scmp.eq.s32.totalorder %s24, 0
      %p58 = por %p56, %p57
      %p59 = scmp.ne.s32.totalorder %s48, %s51
      %p60 = scmp.eq.s32.totalorder %s29, 1
      %p61 = por %p59, %p60
      %p62 = scmp.ne.s32.totalorder %s51, %s52
      %p63 = scmp.eq.s32.totalorder %s29, 0
      %p64 = por %p62, %p63
      %p65 = scmp.ne.s32.totalorder %s51, %s52
      %p66 = scmp.eq.s32.totalorder %s30, 1
      %p67 = por %p65, %p66
      %p69 = scmp.ne.s32.totalorder %s52, %s68
      %p70 = scmp.eq.s32.totalorder %s30, 0
      %p71 = por %p69, %p70
      %s73 = sadd.s32 %s72, 1
      %p76 = scmp.eq.s32.totalorder %s24, 1
      %p77 = scmp.ne.s32.totalorder %s72, %s74
      %p78 = scmp.eq.s32.totalorder %s24, 0
      %p79 = por %p77, %p78
      %p80 = scmp.ne.s32.totalorder %s72, %s74
      %p81 = scmp.eq.s32.totalorder %s29, 1
      %p82 = por %p80, %p81
      %p83 = scmp.ne.s32.totalorder %s74, %s75
      %p84 = scmp.eq.s32.totalorder %s29, 0
      %p85 = por %p83, %p84
      %p86 = scmp.ne.s32.totalorder %s74, %s75
      %p87 = scmp.eq.s32.totalorder %s30, 1
      %p88 = por %p86, %p87
      %p90 = scmp.ne.s32.totalorder %s75, %s89
      %p91 = scmp.eq.s32.totalorder %s30, 0
      %p92 = por %p90, %p91
      %s94 = sadd.s32 %s93, 1
      %p97 = scmp.eq.s32.totalorder %s24, 1
      %p98 = scmp.ne.s32.totalorder %s93, %s95
      %p99 = scmp.eq.s32.totalorder %s24, 0
      %p100 = por %p98, %p99
      %p101 = scmp.ne.s32.totalorder %s93, %s95
      %p102 = scmp.eq.s32.totalorder %s29, 1
      %p103 = por %p101, %p102
      %p104 = scmp.ne.s32.totalorder %s95, %s96
      %p105 = scmp.eq.s32.totalorder %s29, 0
      %p106 = por %p104, %p105
      %p107 = scmp.ne.s32.totalorder %s95, %s96
      %p108 = scmp.eq.s32.totalorder %s30, 1
      %p109 = por %p107, %p108
      %p111 = scmp.ne.s32.totalorder %s96, %s110
      %p112 = scmp.eq.s32.totalorder %s30, 0
      %p113 = por %p111, %p112
      %s115 = sadd.s32 %s114, 1
      %p118 = scmp.eq.s32.totalorder %s24, 1
      %p119 = scmp.ne.s32.totalorder %s114, %s116
      %p120 = scmp.eq.s32.totalorder %s24, 0
      %p121 = por %p119, %p120
      %p122 = scmp.ne.s32.totalorder %s114, %s116
      %p123 = scmp.eq.s32.totalorder %s29, 1
      %p124 = por %p122, %p123
      %p125 = scmp.ne.s32.totalorder %s116, %s117
      %p126 = scmp.eq.s32.totalorder %s29, 0
      %p127 = por %p125, %p126
      %p128 = scmp.ne.s32.totalorder %s116, %s117
      %p129 = scmp.eq.s32.totalorder %s30, 1
      %p130 = por %p128, %p129
      %p132 = scmp.ne.s32.totalorder %s117, %s131
      %p133 = scmp.eq.s32.totalorder %s30, 0
      %p134 = por %p132, %p133
      %s136 = sadd.s32 %s135, 1
      %p139 = scmp.eq.s32.totalorder %s24, 1
      %p140 = scmp.ne.s32.totalorder %s135, %s137
      %p141 = scmp.eq.s32.totalorder %s24, 0
      %p142 = por %p140, %p141
      %p143 = scmp.ne.s32.totalorder %s135, %s137
      %p144 = scmp.eq.s32.totalorder %s29, 1
      %p145 = por %p143, %p144
      %p146 = scmp.ne.s32.totalorder %s137, %s138
      %p147 = scmp.eq.s32.totalorder %s29, 0
      %p148 = por %p146, %p147
      %p149 = scmp.ne.s32.totalorder %s137, %s138
      %p150 = scmp.eq.s32.totalorder %s30, 1
      %p151 = por %p149, %p150
      %p153 = scmp.ne.s32.totalorder %s138, %s152
      %p154 = scmp.eq.s32.totalorder %s30, 0
      %p155 = por %p153, %p154
      %s156 = ssub.s32 %s31, %s43
      %s157 = ssub.s32 %s32, %s39
      %s158 = sor.u32 %s156, %s157
      %p159 = scmp.eq.s32.totalorder %s158, 0
      %s161 = sadd.s32 %s160, 1
      %s162 = scalar_select %p159, %s160, %s161
      %p165 = pneg %p159
      %p166 = scmp.eq.s32.totalorder %s24, 1
      %p167 = por %p165, %p166
      %p168 = scmp.ne.s32.totalorder %s160, %s163
      %p169 = scmp.eq.s32.totalorder %s24, 0
      %p170 = por %p168, %p169
      %p171 = scmp.ne.s32.totalorder %s160, %s163
      %p172 = scmp.eq.s32.totalorder %s29, 1
      %p173 = por %p171, %p172
      %p174 = scmp.ne.s32.totalorder %s163, %s164
      %p175 = scmp.eq.s32.totalorder %s29, 0
      %p176 = por %p174, %p175
      %p177 = scmp.ne.s32.totalorder %s163, %s164
      %p178 = scmp.eq.s32.totalorder %s30, 1
      %p179 = por %p177, %p178
      %p181 = scmp.ne.s32.totalorder %s164, %s180
      %p182 = scmp.eq.s32.totalorder %s30, 0
      %p183 = por %p181, %p182
      %s184 = ssub.s32 %s31, %s43
      %s185 = ssub.s32 %s32, %s39
      %s186 = sor.u32 %s184, %s185
      %p187 = scmp.eq.s32.totalorder %s186, 0
      %s189 = sadd.s32 %s188, 1
      %s190 = scalar_select %p187, %s188, %s189
      %p193 = pneg %p187
      %p194 = scmp.eq.s32.totalorder %s24, 1
      %p195 = por %p193, %p194
      %p196 = scmp.ne.s32.totalorder %s188, %s191
      %p197 = scmp.eq.s32.totalorder %s24, 0
      %p198 = por %p196, %p197
      %p199 = scmp.ne.s32.totalorder %s188, %s191
      %p200 = scmp.eq.s32.totalorder %s29, 1
      %p201 = por %p199, %p200
      %p202 = scmp.ne.s32.totalorder %s191, %s192
      %p203 = scmp.eq.s32.totalorder %s29, 0
      %p204 = por %p202, %p203
      %p205 = scmp.ne.s32.totalorder %s191, %s192
      %p206 = scmp.eq.s32.totalorder %s30, 1
      %p207 = por %p205, %p206
      %p209 = scmp.ne.s32.totalorder %s192, %s208
      %p210 = scmp.eq.s32.totalorder %s30, 0
      %p211 = por %p209, %p210
      %s212 = ssub.s32 %s31, %s43
      %s213 = ssub.s32 %s32, %s39
      %s214 = sor.u32 %s212, %s213
      %p215 = scmp.eq.s32.totalorder %s214, 0
      %s217 = sadd.s32 %s216, 1
      %s218 = scalar_select %p215, %s216, %s217
      %p221 = pneg %p215
      %p222 = scmp.eq.s32.totalorder %s24, 1
      %p223 = por %p221, %p222
      %p224 = scmp.ne.s32.totalorder %s216, %s219
      %p225 = scmp.eq.s32.totalorder %s24, 0
      %p226 = por %p224, %p225
      %p227 = scmp.ne.s32.totalorder %s216, %s219
      %p228 = scmp.eq.s32.totalorder %s29, 1
      %p229 = por %p227, %p228
      %p230 = scmp.ne.s32.totalorder %s219, %s220
      %p231 = scmp.eq.s32.totalorder %s29, 0
      %p232 = por %p230, %p231
      %p233 = scmp.ne.s32.totalorder %s219, %s220
      %p234 = scmp.eq.s32.totalorder %s30, 1
      %p235 = por %p233, %p234
      %p237 = scmp.ne.s32.totalorder %s220, %s236
      %p238 = scmp.eq.s32.totalorder %s30, 0
      %p239 = por %p237, %p238
      %p240 = scmp.le.s32.totalorder 1, %s24
      %p241 = scmp.lt.s32.totalorder %s24, 3
      %p242 = pnand %p240, %p241
      %p243 = pneg %p242
      // Predicated region
      $region9: #{tpu_custom_call.1} parent=5 // pred_check
        _
      $region10: #{tpu_custom_call.1} parent=5 // pred_check_branch
        %245 = sbr.rel (%p242) target = $region12
      $region11: #{tpu_custom_call.1} parent=5 // pred_region
        %s246 = ssub.s32 %s24, 1
        // Predicated region
        $region13: #{tpu_custom_call.1} parent=11 // pred_check
          %p247 = pneg %p85
        $region14: #{tpu_custom_call.1} parent=11 // pred_check_branch
          %249 = sbr.rel (%p247) target = $region16
        $region15: #{tpu_custom_call.1} parent=11 // pred_region
          %251 = vsyncadd [#allocation6], 0
          %s253 = sshll.u32 %s1, 4
          %s254 = int_to_ptr.hbm [resolvable:$true] %s253
          %s255 = sshll.u32 [#allocation5], 4
          %s256 = int_to_ptr.vmem [resolvable:$true] %s255
          %258 = dma.hbm_to_vmem [thread:$0]  %s254, 16, %s256, [#allocation6]
        $region16: #{tpu_custom_call.1} parent=11 // pred_fallthru
          _
        // Predicated region
        $region17: #{tpu_custom_call.1} parent=11 // pred_check
          %p259 = pneg %p106
        $region18: #{tpu_custom_call.1} parent=11 // pred_check_branch
          %261 = sbr.rel (%p259) target = $region20
        $region19: #{tpu_custom_call.1} parent=11 // pred_region
          _
        $region20: #{tpu_custom_call.1} parent=11 // pred_fallthru
          _
        // Predicated region
        $region21: #{tpu_custom_call.1} parent=11 // pred_check
          %p262 = pneg %p127
        $region22: #{tpu_custom_call.1} parent=11 // pred_check_branch
          %264 = sbr.rel (%p262) target = $region24
        $region23: #{tpu_custom_call.1} parent=11 // pred_region
          %266 = vsyncadd [#allocation6], 0
          %s267 = sshll.u32 %s3, 4
          %s268 = int_to_ptr.hbm [resolvable:$true] %s267
          %s269 = sshll.u32 [#allocation7], 4
          %s270 = int_to_ptr.vmem [resolvable:$true] %s269
          %275 = dma.hbm_to_vmem [thread:$0]  %s268, 256, %s270, [#allocation6], 64, 64, 4
        $region24: #{tpu_custom_call.1} parent=11 // pred_fallthru
          _
        // Predicated region
        $region25: #{tpu_custom_call.1} parent=11 // pred_check
          %p276 = pneg %p148
        $region26: #{tpu_custom_call.1} parent=11 // pred_check_branch
          %278 = sbr.rel (%p276) target = $region28
        $region27: #{tpu_custom_call.1} parent=11 // pred_region
          _
        $region28: #{tpu_custom_call.1} parent=11 // pred_fallthru
          _
      $region12: #{tpu_custom_call.1} parent=5 // pred_fallthru
        _
      %p279 = scmp.lt.s32.totalorder %s24, 2
      // Predicated region
      $region29: #{tpu_custom_call.1} parent=5 // pred_check
        %p280 = pneg %p279
      $region30: #{tpu_custom_call.1} parent=5 // pred_check_branch
        %282 = sbr.rel (%p280) target = $region32
      $region31: #{tpu_custom_call.1} parent=5 // pred_region
        // Predicated region
        $region33: #{tpu_custom_call.1} parent=31 // pred_check
          %p283 = pneg %p58
        $region34: #{tpu_custom_call.1} parent=31 // pred_check_branch
          %285 = sbr.rel (%p283) target = $region36
        $region35: #{tpu_custom_call.1} parent=31 // pred_region
          %s286 = sand.u32 %s48, 1
          %s287 = scalar_lea.sflag [#allocation3], %s286
          %s288 = sand.u32 %s48, 1
          %s289 = smul.addr %s288, 8
          %s290 = scalar_lea.vmem [#allocation2], %s289
          %292 = vsyncadd %s287, 0
          %s293 = sadd.s32 %s32, %s31
          %s294 = smul.addr %s293, 8
          %s295 = scalar_lea.hbm %s0, %s294
          %s297 = sshll.u32 %s295, 4
          %s298 = int_to_ptr.hbm [resolvable:$true] %s297
          %s299 = sshll.u32 %s290, 4
          %s300 = int_to_ptr.vmem [resolvable:$true] %s299
          %302 = dma.hbm_to_vmem [thread:$0]  %s298, 128, %s300, %s287
        $region36: #{tpu_custom_call.1} parent=31 // pred_fallthru
          _
      $region32: #{tpu_custom_call.1} parent=5 // pred_fallthru
        _
      %p303 = scmp.le.s32.totalorder 1, %s24
      %p304 = scmp.lt.s32.totalorder %s24, 3
      %p305 = pnand %p303, %p304
      %p306 = pneg %p305
      // Predicated region
      $region37: #{tpu_custom_call.1} parent=5 // pred_check
        _
      $region38: #{tpu_custom_call.1} parent=5 // pred_check_branch
        %308 = sbr.rel (%p305) target = $region40
      $region39: #{tpu_custom_call.1} parent=5 // pred_region
        %s309 = ssub.s32 %s24, 1
        %s310 = sand.u32 %s51, 1
        %s311 = scalar_lea.sflag [#allocation3], %s310
        %s312 = sand.u32 %s51, 1
        %s313 = smul.addr %s312, 8
        %s314 = scalar_lea.vmem [#allocation2], %s313
        // Predicated region
        $region41: #{tpu_custom_call.1} parent=39 // pred_check
          %p315 = pneg %p64
        $region42: #{tpu_custom_call.1} parent=39 // pred_check_branch
          %317 = sbr.rel (%p315) target = $region44
        $region43: #{tpu_custom_call.1} parent=39 // pred_region
          %319 = dma.done %s311, 128
        $region44: #{tpu_custom_call.1} parent=39 // pred_fallthru
          _
        // Predicated region
        $region45: #{tpu_custom_call.1} parent=39 // pred_check
          %p320 = pneg %p85
        $region46: #{tpu_custom_call.1} parent=39 // pred_check_branch
          %322 = sbr.rel (%p320) target = $region48
        $region47: #{tpu_custom_call.1} parent=39 // pred_region
          %324 = dma.done [#allocation6], 16
        $region48: #{tpu_custom_call.1} parent=39 // pred_fallthru
          _
        // Predicated region
        $region49: #{tpu_custom_call.1} parent=39 // pred_check
          %p325 = pneg %p127
        $region50: #{tpu_custom_call.1} parent=39 // pred_check_branch
          %327 = sbr.rel (%p325) target = $region52
        $region51: #{tpu_custom_call.1} parent=39 // pred_region
          %329 = dma.done [#allocation6], 256
        $region52: #{tpu_custom_call.1} parent=39 // pred_fallthru
          _
        %s330 = sand.u32 %s51, 1
        %s331 = scalar_lea.sflag [#allocation3], %s330
        %s332 = sand.u32 %s51, 1
        %s333 = smul.addr %s332, 8
        %s334 = scalar_lea.vmem [#allocation2], %s333
        %p335 = pneg %p64
        %p336 = pneg %p61
        %p337 = pneg %p85
        %p338 = pneg %p82
        %p339 = pneg %p106
        %p340 = pneg %p103
        %p341 = pneg %p127
        %p342 = pneg %p124
        %p343 = pneg %p148
        %p344 = pneg %p145
        %p345 = pneg %p176
        %p346 = pneg %p173
        %s347 = sand.u32 %s163, 1
        %s348 = scalar_lea.sflag [#allocation4], %s347
        %s349 = sand.u32 %s163, 1
        %s350 = smul.addr %s349, 4
        %s351 = scalar_lea.vmem [#allocation8], %s350
        %p352 = pneg %p204
        %p353 = pneg %p201
        %s354 = sand.u32 %s29, 1
        %s355 = scalar_lea.sflag [#allocation10], %s354
        %s356 = sand.u32 %s191, 1
        %s357 = smul.addr %s356, 4
        %s358 = scalar_lea.vmem [#allocation9], %s357
        %p359 = pneg %p232
        %p360 = pneg %p229
        %s361 = sand.u32 %s29, 1
        %s362 = scalar_lea.sflag [#allocation10], %s361
        %s363 = sand.u32 %s219, 1
        %s364 = smul.addr %s363, 4
        %s365 = scalar_lea.vmem [#allocation11], %s364
        %v367 = vld [vmem:[%s314] sm:$0xff]
        %v368 = vld [vmem:[#allocation5] sm:$0x1]
        %v369 = vld [vmem:[%s2] sm:$0x1]
        %vm370 = vcmask 261120
        %v371 = vsel %vm370, %v367, 0.0
        %372 = vadd.xlane.f32.xlu0 %v371
        %v373 = vpop.xlane.xlu0 %372
        %v374 = vrcp.pop 32.0
        %v375 = vmul.f32 32.0, %v374
        %v376 = vsub.f32 1.0, %v375
        %v377 = vmul.f32 %v374, %v376
        %v378 = vadd.f32 %v374, %v377
        %vm379 = vweird.f32 %v374
        %v380 = vsel %vm379, %v374, %v378
        %v381 = vmul.f32 %v373, %v380
        %v382 = vsub.f32 %v367, %v381
        %v383 = vmul.f32 %v382, %v382
        %v384 = vsel %vm370, %v383, 0.0
        %385 = vadd.xlane.f32.xlu0 %v384
        %v386 = vpop.xlane.xlu0 %385
        %v387 = vmul.f32 %v386, %v380
        %v388 = vadd.f32 %v387, 1e-05
        %v389 = vrsqrt.pop %v388
        %v390 = vmul.f32 %v389, %v388
        %v391 = vmul.f32 %v390, %v389
        %v392 = vmul.f32 0.5, %v391
        %v393 = vsub.f32 1.5, %v392
        %v394 = vmul.f32 %v389, %v393
        %vm395 = vweird.f32 %v388
        %vm396 = vweird.f32 %v389
        %vm397 = vmor %vm395, %vm396
        %v398 = vsel %vm397, %v389, %v394
        %v399 = vmul.f32 %v382, %v398
        %v401 = vperm.slane %v368, 0
        %v403 = vmul.f32 %v399, %v401
        %v405 = vperm.slane %v369, 0
        %v407 = vadd.f32 %v403, %v405
        %v408 = vpack.c.bf16 %v407, %v407
        %v409 = vld [vmem:[#allocation7] sm:$0xf]
        %v410 = vld [vmem:[#allocation7 + $0x4] sm:$0xf]
        %v411 = vld [vmem:[#allocation7 + $0x8] sm:$0xf]
        %v412 = vld [vmem:[#allocation7 + $0xc] sm:$0xf]
        %v413 = vld [vmem:[%s4] sm:$0x1]
        %v415 = vperm.slane %v413, 0
        %v421 = vunpack.c.l.b16 %v409
        %v422 = vunpack.c.l.b16 %v410
        %v423 = vunpack.c.l.b16 %v411
        %v424 = vunpack.c.l.b16 %v412
        %v425 = vpack.c.b16 %v422, %v421
        %v426 = vpack.c.b16 %v424, %v423
        %v430 = vsel %vm370, %v408, 0
        %432 = vmatpush.bf16.msra.mxu0 0
        %433 = vmatpush.bf16.msra.mxu0 0
        %434 = vmatpush.bf16.msra.mxu0 0
        %435 = vmatpush.bf16.msra.mxu0 0
        %436 = vmatpush.bf16.msra.mxu0 0
        %437 = vmatpush.bf16.msra.mxu0 0
        %438 = vmatpush.bf16.msra.mxu0 %v426
        %439 = vmatpush.bf16.msra.mxu0 %v425
        %440 = vmatmul.bf16.gmra.mxu0 %v430
        %v441 = vpop.f32.mrf.mxu0
        %v442 = vadd.f32 %v415, %v441
        %v443 = vpop.f32.mrf.mxu0
        %444 = vdwg.mxu0
        %v445 = vpack.c.bf16 %v442, %v442
        %vm446 = vcmask 257024
        %447 = vst.msk [vmem:[%s351] sm:$0xf] %vm446, %v445
        %449 = vrot.lane.b32.xlu0 %v445, 96
        %v450 = vpop.permute.xlu0 %449
        %452 = vst.msk [vmem:[%s358] sm:$0xf] %vm446, %v450
        %453 = vrot.lane.b32.xlu0 %v445, 64
        %v454 = vpop.permute.xlu0 %453
        %456 = vst.msk [vmem:[%s365] sm:$0xf] %vm446, %v454
        %s457 = sand.u32 %s163, 1
        %s458 = scalar_lea.sflag [#allocation4], %s457
        %s459 = sand.u32 %s163, 1
        %s460 = smul.addr %s459, 4
        %s461 = scalar_lea.vmem [#allocation8], %s460
        %s462 = sand.u32 %s29, 1
        %s463 = scalar_lea.sflag [#allocation10], %s462
        %s464 = sand.u32 %s191, 1
        %s465 = smul.addr %s464, 4
        %s466 = scalar_lea.vmem [#allocation9], %s465
        %s467 = sand.u32 %s29, 1
        %s468 = scalar_lea.sflag [#allocation10], %s467
        %s469 = sand.u32 %s219, 1
        %s470 = smul.addr %s469, 4
        %s471 = scalar_lea.vmem [#allocation11], %s470
        // Predicated region
        $region53: #{tpu_custom_call.1} parent=39 // pred_check
          %p472 = pneg %p173
        $region54: #{tpu_custom_call.1} parent=39 // pred_check_branch
          %474 = sbr.rel (%p472) target = $region56
        $region55: #{tpu_custom_call.1} parent=39 // pred_region
          %476 = vsyncadd %s458, 0
          %s477 = sadd.s32 %s34, %s33
          %s478 = smul.addr %s477, 4
          %s479 = scalar_lea.hbm %s5, %s478
          %s481 = sshll.u32 %s461, 4
          %s482 = int_to_ptr.vmem [resolvable:$true] %s481
          %s483 = sshll.u32 %s479, 4
          %s484 = int_to_ptr.hbm [resolvable:$true] %s483
          %486 = dma.vmem_to_hbm [thread:$0]  %s482, 64, %s484, %s458
        $region56: #{tpu_custom_call.1} parent=39 // pred_fallthru
          _
        // Predicated region
        $region57: #{tpu_custom_call.1} parent=39 // pred_check
          %p487 = pneg %p201
        $region58: #{tpu_custom_call.1} parent=39 // pred_check_branch
          %489 = sbr.rel (%p487) target = $region60
        $region59: #{tpu_custom_call.1} parent=39 // pred_region
          %491 = vsyncadd %s463, 0
          %s492 = sadd.s32 %s34, %s33
          %s493 = smul.addr %s492, 4
          %s494 = scalar_lea.hbm %s6, %s493
          %s496 = sshll.u32 %s466, 4
          %s497 = int_to_ptr.vmem [resolvable:$true] %s496
          %s498 = sshll.u32 %s494, 4
          %s499 = int_to_ptr.hbm [resolvable:$true] %s498
          %501 = dma.vmem_to_hbm [thread:$0]  %s497, 64, %s499, %s463
        $region60: #{tpu_custom_call.1} parent=39 // pred_fallthru
          _
        // Predicated region
        $region61: #{tpu_custom_call.1} parent=39 // pred_check
          %p502 = pneg %p229
        $region62: #{tpu_custom_call.1} parent=39 // pred_check_branch
          %504 = sbr.rel (%p502) target = $region64
        $region63: #{tpu_custom_call.1} parent=39 // pred_region
          %506 = vsyncadd %s468, 0
          %s507 = sadd.s32 %s34, %s33
          %s508 = smul.addr %s507, 4
          %s509 = scalar_lea.hbm %s7, %s508
          %s511 = sshll.u32 %s471, 4
          %s512 = int_to_ptr.vmem [resolvable:$true] %s511
          %s513 = sshll.u32 %s509, 4
          %s514 = int_to_ptr.hbm [resolvable:$true] %s513
          %516 = dma.vmem_to_hbm [thread:$0]  %s512, 64, %s514, %s468
        $region64: #{tpu_custom_call.1} parent=39 // pred_fallthru
          _
      $region40: #{tpu_custom_call.1} parent=5 // pred_fallthru
        _
      %p517 = scmp.le.s32.totalorder 2, %s24
      // Predicated region
      $region65: #{tpu_custom_call.1} parent=5 // pred_check
        %p518 = pneg %p517
      $region66: #{tpu_custom_call.1} parent=5 // pred_check_branch
        %520 = sbr.rel (%p518) target = $region68
      $region67: #{tpu_custom_call.1} parent=5 // pred_region
        %s521 = ssub.s32 %s24, 2
        // Predicated region
        $region69: #{tpu_custom_call.1} parent=67 // pred_check
          %p522 = pneg %p179
        $region70: #{tpu_custom_call.1} parent=67 // pred_check_branch
          %524 = sbr.rel (%p522) target = $region72
        $region71: #{tpu_custom_call.1} parent=67 // pred_region
          %s525 = sand.u32 %s164, 1
          %s526 = scalar_lea.sflag [#allocation4], %s525
          %s527 = sand.u32 %s164, 1
          %s528 = smul.addr %s527, 4
          %s529 = scalar_lea.vmem [#allocation8], %s528
          %531 = dma.done %s526, 64
        $region72: #{tpu_custom_call.1} parent=67 // pred_fallthru
          _
        // Predicated region
        $region73: #{tpu_custom_call.1} parent=67 // pred_check
          %p532 = pneg %p207
        $region74: #{tpu_custom_call.1} parent=67 // pred_check_branch
          %534 = sbr.rel (%p532) target = $region76
        $region75: #{tpu_custom_call.1} parent=67 // pred_region
          %s535 = sand.u32 %s30, 1
          %s536 = scalar_lea.sflag [#allocation10], %s535
          %s537 = sand.u32 %s192, 1
          %s538 = smul.addr %s537, 4
          %s539 = scalar_lea.vmem [#allocation9], %s538
          %541 = dma.done %s536, 64
        $region76: #{tpu_custom_call.1} parent=67 // pred_fallthru
          _
        // Predicated region
        $region77: #{tpu_custom_call.1} parent=67 // pred_check
          %p542 = pneg %p235
        $region78: #{tpu_custom_call.1} parent=67 // pred_check_branch
          %544 = sbr.rel (%p542) target = $region80
        $region79: #{tpu_custom_call.1} parent=67 // pred_region
          %s545 = sand.u32 %s30, 1
          %s546 = scalar_lea.sflag [#allocation10], %s545
          %s547 = sand.u32 %s220, 1
          %s548 = smul.addr %s547, 4
          %s549 = scalar_lea.vmem [#allocation11], %s548
          %551 = dma.done %s546, 64
        $region80: #{tpu_custom_call.1} parent=67 // pred_fallthru
          _
      $region68: #{tpu_custom_call.1} parent=5 // pred_fallthru
        _
    $region6: #{tpu_custom_call.1} parent=1 // loop_footer
      %s28 = sadd.s32 1, %s24
    $region7: #{tpu_custom_call.1} parent=1 // loop_footer_branch
      %23 = sbr.rel target = $region3
    $region8: #{tpu_custom_call.1} parent=1 // loop_exit
      _
    %552 = vsyncpa [#allocation3], 1
    %s553 = scalar_lea.sflag [#allocation3], 1
    %554 = vsyncpa %s553, 1
    %555 = vsyncpa [#allocation6], 1
    %556 = vsyncpa [#allocation4], 1
    %s557 = scalar_lea.sflag [#allocation4], 1
    %558 = vsyncpa %s557, 1
    %559 = vsyncpa [#allocation10], 1
    %s560 = scalar_lea.sflag [#allocation10], 1
    %561 = vsyncpa %s560, 1

</llo_original>
